<compile_context>
chip_gen: v5e
topology: v5e:2x2
jax: 0.10.0
libtpu: 0.0.40
codegen_flags: <defaults>
</compile_context>

<pallas_src>
import functools

import jax
import jax.numpy as jnp
from jax.experimental import pallas as pl
from jax.experimental.pallas import tpu as pltpu


def _derive_vmem_limit():
    """Per-generation scoped-VMEM limit (~75% of physical); safe fallback 48 MiB."""
    try:
        cap = pltpu.get_tpu_info().vmem_capacity_bytes
        return int(cap * 0.75)
    except Exception:
        return 48 * 1024 * 1024   # safe on v5e / v6e / v7x


_VMEM_LIMIT = _derive_vmem_limit()
# Budget for our own blocks / transients (headroom for compiler scratch, sems).
_BLOCK_BUDGET = int(_VMEM_LIMIT * 0.7)


def _pick_tile(dim, preferred, align):
    """Largest align-multiple tile <= preferred dividing dim, or the full dim."""
    if dim <= preferred:
        return dim
    t = (preferred // align) * align
    while t >= align:
        if dim % t == 0:
            return t
        t -= align
    return dim   # no aligned divisor: full dim (caller budget-checks and raises)


# ---------------------------------------------------------------------------
# Kernel 1a: K-resident linear  y = x @ W + b   (no k axis, no accumulator)
# ---------------------------------------------------------------------------
def _linear_kres_kernel(x_ref, w_ref, b_ref, o_ref):
    acc = jnp.dot(x_ref[...], w_ref[...], preferred_element_type=jnp.float32)
    o_ref[...] = (acc + b_ref[...].astype(jnp.float32)).astype(o_ref.dtype)


# ---------------------------------------------------------------------------
# Kernel 1b: fallback tiled linear with a k grid axis + f32 VMEM accumulator
# ---------------------------------------------------------------------------
def _linear_acc_kernel(x_ref, w_ref, b_ref, o_ref, acc_ref):
    k = pl.program_id(2)

    @pl.when(k == 0)
    def _():
        acc_ref[...] = jnp.zeros_like(acc_ref)

    acc_ref[...] += jnp.dot(x_ref[...], w_ref[...],
                            preferred_element_type=jnp.float32)

    @pl.when(k == pl.num_programs(2) - 1)
    def _():
        o_ref[...] = (acc_ref[...] + b_ref[...].astype(jnp.float32)).astype(o_ref.dtype)


def linear(x2d, w, b, *, out_dtype):
    """y = x2d @ w + b, tiled & pipelined; K-resident whenever Din fits VMEM."""
    M, Din = x2d.shape
    Dout = w.shape[1]
    in_b = jnp.dtype(x2d.dtype).itemsize
    w_b = jnp.dtype(w.dtype).itemsize
    out_b = jnp.dtype(out_dtype).itemsize
    flops = 2 * M * Din * Dout

    def kres_cost(tm, tn):
        return (2 * tm * Din * in_b        # double-buffered x block
                + 2 * Din * tn * w_b       # double-buffered w block
                + 2 * tn * 4               # bias (f32)
                + 2 * tm * tn * out_b      # double-buffered out block
                + tm * tn * 4)             # f32 matmul transient

    # --- Preferred: K-resident (drops k axis, accumulator and init/finalize) ---
    tn = _pick_tile(Dout, 1024, 128)
    for tm_pref in (1024, 512, 256, 128):
        tm = _pick_tile(M, tm_pref, 128)
        if kres_cost(tm, tn) <= _BLOCK_BUDGET:
            bytes_accessed = (M * Din * in_b * (Dout // tn)
                              + Din * Dout * w_b * (M // tm)
                              + M * Dout * out_b + Dout * 4)
            return pl.pallas_call(
                _linear_kres_kernel,
                out_shape=jax.ShapeDtypeStruct((M, Dout), out_dtype),
                grid=(M // tm, Dout // tn),
                in_specs=[
                    pl.BlockSpec((tm, Din), lambda i, j: (i, 0)),
                    pl.BlockSpec((Din, tn), lambda i, j: (0, j)),
                    pl.BlockSpec((1, tn), lambda i, j: (0, j)),
                ],
                out_specs=pl.BlockSpec((tm, tn), lambda i, j: (i, j)),
                compiler_params=pltpu.CompilerParams(
                    dimension_semantics=("parallel", "parallel"),
                    vmem_limit_bytes=_VMEM_LIMIT,
                ),
                cost_estimate=pl.CostEstimate(
                    flops=flops, transcendentals=0,
                    bytes_accessed=bytes_accessed),
            )(x2d, w, b.reshape(1, Dout))

    # --- Fallback: k grid axis with an f32 accumulator scratch ---
    tm = _pick_tile(M, 512, 128)
    tn = _pick_tile(Dout, 512, 128)
    tk = _pick_tile(Din, 512, 128)
    cost = (2 * tm * tk * in_b + 2 * tk * tn * w_b + 2 * tn * 4
            + 2 * tm * tn * out_b + tm * tn * 4)
    if cost > _BLOCK_BUDGET:
        raise ValueError(
            f"linear: no tiling of ({M},{Din})x({Din},{Dout}) fits the "
            f"{_BLOCK_BUDGET // (1 << 20)} MiB VMEM block budget")
    bytes_accessed = (M * Din * in_b * (Dout // tn)
                      + Din * Dout * w_b * (M // tm)
                      + M * Dout * out_b + Dout * 4)
    return pl.pallas_call(
        _linear_acc_kernel,
        out_shape=jax.ShapeDtypeStruct((M, Dout), out_dtype),
        grid=(M // tm, Dout // tn, Din // tk),
        in_specs=[
            pl.BlockSpec((tm, tk), lambda i, j, k: (i, k)),
            pl.BlockSpec((tk, tn), lambda i, j, k: (k, j)),
            pl.BlockSpec((1, tn), lambda i, j, k: (0, j)),   # bias varies with j only
        ],
        out_specs=pl.BlockSpec((tm, tn), lambda i, j, k: (i, j)),
        scratch_shapes=[pltpu.VMEM((tm, tn), jnp.float32)],
        compiler_params=pltpu.CompilerParams(
            dimension_semantics=("parallel", "parallel", "arbitrary"),
            vmem_limit_bytes=_VMEM_LIMIT,
        ),
        cost_estimate=pl.CostEstimate(
            flops=flops, transcendentals=0, bytes_accessed=bytes_accessed),
    )(x2d, w, b.reshape(1, Dout))


# ---------------------------------------------------------------------------
# Kernel 2: fused multi-head attention, fed directly from the (B*S, 3C) qkv
# buffer; output is head-merged (B*S, C), exactly the layout proj consumes.
# ---------------------------------------------------------------------------
def _attn_kernel(qkv_ref, o_ref, *, scale, num_heads, seq_len, batch_per_block):
    C = o_ref.shape[-1]
    hd = C // num_heads

    for b in range(batch_per_block):
        rows = pl.ds(b * seq_len, seq_len)
        for h in range(num_heads):
            # Static Ref slices -> targeted aligned vector loads; no (S,3C)
            # value copy + lane extraction per head.
            # (For best layout, hd would ideally be 128-aligned; acceptable as-is.)
            qh = qkv_ref[rows, h * hd:(h + 1) * hd] * scale            # scale folded into q
            kh = qkv_ref[rows, C + h * hd:C + (h + 1) * hd]
            vh = qkv_ref[rows, 2 * C + h * hd:2 * C + (h + 1) * hd]

            # Contract the last dims directly (no materialised k.T).
            s = jax.lax.dot_general(
                qh, kh, (((1,), (1,)), ((), ())),
                preferred_element_type=jnp.float32)                    # (S, S) f32

            m = jnp.max(s, axis=-1, keepdims=True)
            p = jnp.exp(s - m)
            denom = jnp.sum(p, axis=-1, keepdims=True)
            p = p * pl.reciprocal(denom, approx=True)                  # EUP, ~free

            out_h = jnp.dot(p.astype(vh.dtype), vh,
                            preferred_element_type=jnp.float32)        # (S, hd) f32

            # Eager per-head writeback into the (gb*S, C) VMEM output block:
            # bounds live ranges, no head_outs list, no concat lane shuffles.
            o_ref[rows, h * hd:(h + 1) * hd] = out_h.astype(o_ref.dtype)


def _pick_batch_group(B, seq_len, C, qkv_bytes, out_bytes):
    """Largest batch group whose blocks fit the VMEM budget, keeping >=2 grid steps."""
    score_bytes = seq_len * seq_len * 4 + 2 * seq_len * C * 4   # f32 scores + transients
    if score_bytes > _BLOCK_BUDGET:
        # Hard check instead of a silent VMEM blow-up for long sequences.
        raise ValueError(
            "attention: the full (S,S) f32 score block does not fit VMEM; "
            "an online-softmax (flash) variant is required for this seq_len")
    min_steps = 2 if B >= 2 else 1   # keep both v7x TensorCores busy on 'parallel'
    best = 1
    for gb in range(1, min(B, 8) + 1):
        if B % gb != 0 or (B // gb) < min_steps:
            continue
        cost = (2 * gb * seq_len * 3 * C * qkv_bytes    # double-buffered qkv block
                + 2 * gb * seq_len * C * out_bytes      # double-buffered output block
                + score_bytes)
        if cost <= _BLOCK_BUDGET:
            best = gb
    return best


def multihead_attention(qkv, *, num_heads, seq_len, scale):
    BS, threeC = qkv.shape
    C = threeC // 3
    assert threeC == 3 * C, "qkv last dim must be 3*C"
    assert C % num_heads == 0, "C must be divisible by num_heads"
    assert BS % seq_len == 0, "rows must be a multiple of seq_len"
    B = BS // seq_len
    hd = C // num_heads

    qkv_bytes = jnp.dtype(qkv.dtype).itemsize
    gb = _pick_batch_group(B, seq_len, C, qkv_bytes, qkv_bytes)

    kernel = functools.partial(
        _attn_kernel, scale=scale, num_heads=num_heads,
        seq_len=seq_len, batch_per_block=gb)

    flops = 4 * B * num_heads * seq_len * seq_len * hd      # QK^T + PV
    transcendentals = B * num_heads * seq_len * seq_len     # exp
    bytes_accessed = BS * threeC * qkv_bytes + BS * C * qkv_bytes

    return pl.pallas_call(
        kernel,
        out_shape=jax.ShapeDtypeStruct((BS, C), qkv.dtype),
        grid=(B // gb,),
        in_specs=[pl.BlockSpec((gb * seq_len, threeC), lambda i: (i, 0))],
        out_specs=pl.BlockSpec((gb * seq_len, C), lambda i: (i, 0)),
        compiler_params=pltpu.CompilerParams(
            dimension_semantics=("parallel",),
            vmem_limit_bytes=_VMEM_LIMIT,
        ),
        cost_estimate=pl.CostEstimate(
            flops=flops, transcendentals=transcendentals,
            bytes_accessed=bytes_accessed),
    )(qkv)


# ---------------------------------------------------------------------------
# Full forward pass (mirrors Attention.forward with use_rel_pos=False, cait=False)
# ---------------------------------------------------------------------------
def attention_forward(x, params, num_heads):
    B, H, W, C = x.shape
    assert C % num_heads == 0, "dim must be divisible by num_heads"
    S = H * W
    hd = C // num_heads
    scale = hd ** (-0.5)

    # Cast activations and weights to bf16 ONCE in the wrapper: halves the
    # dominant activation/weight HBM traffic of the DMA-bound linears and keeps
    # the MXU at full rate (f32 accumulation inside the kernels).
    x2d = x.reshape(B * S, C).astype(jnp.bfloat16)
    w_qkv = params["qkv_w"].astype(jnp.bfloat16)
    w_proj = params["proj_w"].astype(jnp.bfloat16)

    # qkv projection, kept in bf16 in its natural (B*S, 3C) layout.
    qkv = linear(x2d, w_qkv, params["qkv_b"], out_dtype=jnp.bfloat16)

    # Fused attention straight off the qkv buffer; output already has heads
    # merged lane-dense as (B*S, C) -> no XLA transposes anywhere.
    attn_out = multihead_attention(qkv, num_heads=num_heads, seq_len=S, scale=scale)

    # output projection
    y = linear(attn_out, w_proj, params["proj_b"], out_dtype=jnp.float32)
    return y.reshape(B, H, W, C)


# ---------------------------------------------------------------------------
# Parameter init (mimics nn.Linear shapes; stored as (in, out))
# ---------------------------------------------------------------------------
def init_params(key, dim):
    k1, k2, k3, k4 = jax.random.split(key, 4)
    s = 1.0 / jnp.sqrt(dim)
    return {
        "qkv_w": jax.random.uniform(k1, (dim, 3 * dim), jnp.float32, -s, s),
        "qkv_b": jax.random.uniform(k2, (3 * dim,), jnp.float32, -s, s),
        "proj_w": jax.random.uniform(k3, (dim, dim), jnp.float32, -s, s),
        "proj_b": jax.random.uniform(k4, (dim,), jnp.float32, -s, s),
    }


# Pure-JAX f32 reference (matches the PyTorch forward)
def _reference(x, params, num_heads):
    B, H, W, C = x.shape
    S = H * W
    hd = C // num_heads
    scale = hd ** (-0.5)
    qkv = x.reshape(B * S, C) @ params["qkv_w"] + params["qkv_b"]
    qkv = qkv.reshape(B, S, 3, num_heads, hd)
    qkv = jnp.transpose(qkv, (2, 3, 0, 1, 4)).reshape(3, num_heads * B, S, hd)
    q, k, v = qkv[0], qkv[1], qkv[2]
    attn = jax.nn.softmax((q * scale) @ jnp.swapaxes(k, -2, -1), axis=-1)
    out = attn @ v
    out = out.reshape(num_heads, B, H, W, hd)
    out = jnp.transpose(out, (1, 2, 3, 0, 4)).reshape(B * S, C)
    y = out @ params["proj_w"] + params["proj_b"]
    return y.reshape(B, H, W, C)


if __name__ == "__main__":
    B, H, W, dim, num_heads = 2, 8, 8, 32, 4

    key = jax.random.PRNGKey(0)
    kx, kp = jax.random.split(key)
    x = jax.random.normal(kx, (B, H, W, dim), jnp.float32)
    params = init_params(kp, dim)

    fwd = jax.jit(functools.partial(attention_forward, num_heads=num_heads))
    y = jax.block_until_ready(fwd(x, params))

    y_ref = _reference(x, params, num_heads)
    assert y.shape == (B, H, W, dim)
    # bf16 MXU inputs + approx softmax reciprocal -> tolerance-based check.
    assert jnp.allclose(y, y_ref, atol=5e-2, rtol=5e-2), (
        "max abs diff %f" % float(jnp.max(jnp.abs(y - y_ref))))

    print("KERNEL_OK")
</pallas_src>

<mosaic_0001>
module attributes {stable_mosaic.version = 11 : i64} {
  func.func @_linear_kres_kernel(%arg0: i32, %arg1: i32, %arg2: memref<128x32xbf16, #tpu.memory_space<vmem>>, %arg3: memref<32x96xbf16, #tpu.memory_space<vmem>>, %arg4: memref<1x96xf32, #tpu.memory_space<vmem>>, %arg5: memref<128x96xbf16, #tpu.memory_space<vmem>>) attributes {dimension_semantics = [#tpu.dimension_semantics<parallel>, #tpu.dimension_semantics<parallel>], iteration_bounds = array<i64: 1, 1>, scalar_prefetch = 0 : i64, scratch_operands = 0 : i64, tpu.core_type = #tpu.core_type<tc>, window_params = [{transform_indices = @transform_0, window_bounds = array<i64: 128, 32>}, {transform_indices = @transform_1, window_bounds = array<i64: 32, 96>}, {transform_indices = @transform_2, window_bounds = array<i64: 1, 96>}, {transform_indices = @transform_3, window_bounds = array<i64: 128, 96>}]} {
    %c0 = arith.constant 0 : index
    %c0_0 = arith.constant 0 : index
    %0 = vector.load %arg2[%c0, %c0_0] : memref<128x32xbf16, #tpu.memory_space<vmem>>, vector<128x32xbf16>
    %c0_1 = arith.constant 0 : index
    %c0_2 = arith.constant 0 : index
    %1 = vector.load %arg3[%c0_1, %c0_2] : memref<32x96xbf16, #tpu.memory_space<vmem>>, vector<32x96xbf16>
    %cst = arith.constant dense<0.000000e+00> : vector<128x96xf32>
    %2 = tpu.matmul %0, %1, %cst {dimension_numbers = #tpu.dot_dimension_numbers<[1], [0], [0], [1], [0, 0, 1, 1], [], []>} : vector<128x32xbf16>, vector<32x96xbf16>, vector<128x96xf32> -> vector<128x96xf32>
    %c0_3 = arith.constant 0 : index
    %c0_4 = arith.constant 0 : index
    %3 = vector.load %arg4[%c0_3, %c0_4] : memref<1x96xf32, #tpu.memory_space<vmem>>, vector<1x96xf32>
    %4 = vector.broadcast %3 : vector<1x96xf32> to vector<128x96xf32>
    %5 = arith.addf %2, %4 : vector<128x96xf32>
    %6 = arith.truncf %5 : vector<128x96xf32> to vector<128x96xbf16>
    %c0_5 = arith.constant 0 : index
    %c0_6 = arith.constant 0 : index
    %7 = vector.load %arg5[%c0_5, %c0_6] : memref<128x96xbf16, #tpu.memory_space<vmem>>, vector<128x96xbf16>
    tpu.vector_store %arg5[%c0_5, %c0_6], %6 {strides = array<i32>} : memref<128x96xbf16, #tpu.memory_space<vmem>>, vector<128x96xbf16>,
    return
  }
  func.func @transform_0(%arg0: i32, %arg1: i32) -> (i32, i32) {
    %c0_i32 = arith.constant 0 : i32
    %c0_i32_0 = arith.constant 0 : i32
    return %arg0, %c0_i32 : i32, i32
  }
  func.func @transform_1(%arg0: i32, %arg1: i32) -> (i32, i32) {
    %c0_i32 = arith.constant 0 : i32
    %c0_i32_0 = arith.constant 0 : i32
    return %c0_i32, %arg1 : i32, i32
  }
  func.func @transform_2(%arg0: i32, %arg1: i32) -> (i32, i32) {
    %c0_i32 = arith.constant 0 : i32
    %c0_i32_0 = arith.constant 0 : i32
    return %c0_i32, %arg1 : i32, i32
  }
  func.func @transform_3(%arg0: i32, %arg1: i32) -> (i32, i32) {
    %c0_i32 = arith.constant 0 : i32
    return %arg0, %arg1 : i32, i32
  }
}

module attributes {stable_mosaic.version = 11 : i64} {
  func.func @_linear_kres_kernel(%arg0: i32, %arg1: i32, %arg2: memref<128x32xbf16, #tpu.memory_space<vmem>>, %arg3: memref<32x32xbf16, #tpu.memory_space<vmem>>, %arg4: memref<1x32xf32, #tpu.memory_space<vmem>>, %arg5: memref<128x32xf32, #tpu.memory_space<vmem>>) attributes {dimension_semantics = [#tpu.dimension_semantics<parallel>, #tpu.dimension_semantics<parallel>], iteration_bounds = array<i64: 1, 1>, scalar_prefetch = 0 : i64, scratch_operands = 0 : i64, tpu.core_type = #tpu.core_type<tc>, window_params = [{transform_indices = @transform_0, window_bounds = array<i64: 128, 32>}, {transform_indices = @transform_1, window_bounds = array<i64: 32, 32>}, {transform_indices = @transform_2, window_bounds = array<i64: 1, 32>}, {transform_indices = @transform_3, window_bounds = array<i64: 128, 32>}]} {
    %c0 = arith.constant 0 : index
    %c0_0 = arith.constant 0 : index
    %0 = vector.load %arg2[%c0, %c0_0] : memref<128x32xbf16, #tpu.memory_space<vmem>>, vector<128x32xbf16>
    %c0_1 = arith.constant 0 : index
    %c0_2 = arith.constant 0 : index
    %1 = vector.load %arg3[%c0_1, %c0_2] : memref<32x32xbf16, #tpu.memory_space<vmem>>, vector<32x32xbf16>
    %cst = arith.constant dense<0.000000e+00> : vector<128x32xf32>
    %2 = tpu.matmul %0, %1, %cst {dimension_numbers = #tpu.dot_dimension_numbers<[1], [0], [0], [1], [0, 0, 1, 1], [], []>} : vector<128x32xbf16>, vector<32x32xbf16>, vector<128x32xf32> -> vector<128x32xf32>
    %c0_3 = arith.constant 0 : index
    %c0_4 = arith.constant 0 : index
    %3 = vector.load %arg4[%c0_3, %c0_4] : memref<1x32xf32, #tpu.memory_space<vmem>>, vector<1x32xf32>
    %4 = vector.broadcast %3 : vector<1x32xf32> to vector<128x32xf32>
    %5 = arith.addf %2, %4 : vector<128x32xf32>
    %c0_5 = arith.constant 0 : index
    %c0_6 = arith.constant 0 : index
    %6 = vector.load %arg5[%c0_5, %c0_6] : memref<128x32xf32, #tpu.memory_space<vmem>>, vector<128x32xf32>
    tpu.vector_store %arg5[%c0_5, %c0_6], %5 {strides = array<i32>} : memref<128x32xf32, #tpu.memory_space<vmem>>, vector<128x32xf32>,
    return
  }
  func.func @transform_0(%arg0: i32, %arg1: i32) -> (i32, i32) {
    %c0_i32 = arith.constant 0 : i32
    %c0_i32_0 = arith.constant 0 : i32
    return %arg0, %c0_i32 : i32, i32
  }
  func.func @transform_1(%arg0: i32, %arg1: i32) -> (i32, i32) {
    %c0_i32 = arith.constant 0 : i32
    %c0_i32_0 = arith.constant 0 : i32
    return %c0_i32, %arg1 : i32, i32
  }
  func.func @transform_2(%arg0: i32, %arg1: i32) -> (i32, i32) {
    %c0_i32 = arith.constant 0 : i32
    %c0_i32_0 = arith.constant 0 : i32
    return %c0_i32, %arg1 : i32, i32
  }
  func.func @transform_3(%arg0: i32, %arg1: i32) -> (i32, i32) {
    %c0_i32 = arith.constant 0 : i32
    return %arg0, %arg1 : i32, i32
  }
}

module attributes {stable_mosaic.version = 11 : i64} {
  func.func @_attn_kernel(%arg0: i32, %arg1: memref<64x96xbf16, #tpu.memory_space<vmem>>, %arg2: memref<64x32xbf16, #tpu.memory_space<vmem>>) attributes {dimension_semantics = [#tpu.dimension_semantics<parallel>], iteration_bounds = array<i64: 2>, scalar_prefetch = 0 : i64, scratch_operands = 0 : i64, tpu.core_type = #tpu.core_type<tc>, window_params = [{transform_indices = @transform_0, window_bounds = array<i64: 64, 96>}, {transform_indices = @transform_1, window_bounds = array<i64: 64, 32>}]} {
    %c0 = arith.constant 0 : index
    %c0_0 = arith.constant 0 : index
    %0 = vector.load %arg1[%c0, %c0_0] : memref<64x96xbf16, #tpu.memory_space<vmem>>, vector<64x8xbf16>
    %cst = arith.constant 3.535160e-01 : bf16
    %1 = vector.broadcast %cst : bf16 to vector<64x8xbf16>
    %2 = arith.mulf %0, %1 : vector<64x8xbf16>
    %c0_1 = arith.constant 0 : index
    %c32 = arith.constant 32 : index
    %3 = vector.load %arg1[%c0_1, %c32] : memref<64x96xbf16, #tpu.memory_space<vmem>>, vector<64x8xbf16>
    %c0_2 = arith.constant 0 : index
    %c64 = arith.constant 64 : index
    %4 = vector.load %arg1[%c0_2, %c64] : memref<64x96xbf16, #tpu.memory_space<vmem>>, vector<64x8xbf16>
    %cst_3 = arith.constant dense<0.000000e+00> : vector<64x64xf32>
    %5 = tpu.matmul %2, %3, %cst_3 {dimension_numbers = #tpu.dot_dimension_numbers<[1], [1], [0], [0], [0, 0, 1, 0], [], []>} : vector<64x8xbf16>, vector<64x8xbf16>, vector<64x64xf32> -> vector<64x64xf32>
    %cst_4 = arith.constant dense<0xFF800000> : vector<64xf32>
    %6 = vector.multi_reduction <maximumf>, %5, %cst_4 [1] : vector<64x64xf32> to vector<64xf32>
    %7 = vector.shape_cast %6 : vector<64xf32> to vector<64x1xf32>
    %8 = vector.broadcast %7 : vector<64x1xf32> to vector<64x64xf32>
    %9 = arith.subf %5, %8 : vector<64x64xf32>
    %10 = math.exp %9 : vector<64x64xf32>
    %cst_5 = arith.constant dense<0.000000e+00> : vector<64xf32>
    %11 = vector.multi_reduction <add>, %10, %cst_5 [1] : vector<64x64xf32> to vector<64xf32>
    %12 = vector.shape_cast %11 : vector<64xf32> to vector<64x1xf32>
    %13 = tpu.reciprocal %12 {approx = true} : vector<64x1xf32> -> vector<64x1xf32>
    %14 = vector.broadcast %13 : vector<64x1xf32> to vector<64x64xf32>
    %15 = arith.mulf %10, %14 : vector<64x64xf32>
    %16 = arith.truncf %15 : vector<64x64xf32> to vector<64x64xbf16>
    %cst_6 = arith.constant dense<0.000000e+00> : vector<64x8xf32>
    %17 = tpu.matmul %16, %4, %cst_6 {dimension_numbers = #tpu.dot_dimension_numbers<[1], [0], [0], [1], [0, 0, 1, 1], [], []>} : vector<64x64xbf16>, vector<64x8xbf16>, vector<64x8xf32> -> vector<64x8xf32>
    %18 = arith.truncf %17 : vector<64x8xf32> to vector<64x8xbf16>
    %c0_7 = arith.constant 0 : index
    %c0_8 = arith.constant 0 : index
    %19 = vector.load %arg2[%c0_7, %c0_8] : memref<64x32xbf16, #tpu.memory_space<vmem>>, vector<64x8xbf16>
    tpu.vector_store %arg2[%c0_7, %c0_8], %18 {strides = array<i32>} : memref<64x32xbf16, #tpu.memory_space<vmem>>, vector<64x8xbf16>,
    %c0_9 = arith.constant 0 : index
    %c8 = arith.constant 8 : index
    %20 = vector.load %arg1[%c0_9, %c8] : memref<64x96xbf16, #tpu.memory_space<vmem>>, vector<64x8xbf16>
    %cst_10 = arith.constant 3.535160e-01 : bf16
    %21 = vector.broadcast %cst_10 : bf16 to vector<64x8xbf16>
    %22 = arith.mulf %20, %21 : vector<64x8xbf16>
    %c0_11 = arith.constant 0 : index
    %c40 = arith.constant 40 : index
    %23 = vector.load %arg1[%c0_11, %c40] : memref<64x96xbf16, #tpu.memory_space<vmem>>, vector<64x8xbf16>
    %c0_12 = arith.constant 0 : index
    %c72 = arith.constant 72 : index
    %24 = vector.load %arg1[%c0_12, %c72] : memref<64x96xbf16, #tpu.memory_space<vmem>>, vector<64x8xbf16>
    %cst_13 = arith.constant dense<0.000000e+00> : vector<64x64xf32>
    %25 = tpu.matmul %22, %23, %cst_13 {dimension_numbers = #tpu.dot_dimension_numbers<[1], [1], [0], [0], [0, 0, 1, 0], [], []>} : vector<64x8xbf16>, vector<64x8xbf16>, vector<64x64xf32> -> vector<64x64xf32>
    %cst_14 = arith.constant dense<0xFF800000> : vector<64xf32>
    %26 = vector.multi_reduction <maximumf>, %25, %cst_14 [1] : vector<64x64xf32> to vector<64xf32>
    %27 = vector.shape_cast %26 : vector<64xf32> to vector<64x1xf32>
    %28 = vector.broadcast %27 : vector<64x1xf32> to vector<64x64xf32>
    %29 = arith.subf %25, %28 : vector<64x64xf32>
    %30 = math.exp %29 : vector<64x64xf32>
    %cst_15 = arith.constant dense<0.000000e+00> : vector<64xf32>
    %31 = vector.multi_reduction <add>, %30, %cst_15 [1] : vector<64x64xf32> to vector<64xf32>
    %32 = vector.shape_cast %31 : vector<64xf32> to vector<64x1xf32>
    %33 = tpu.reciprocal %32 {approx = true} : vector<64x1xf32> -> vector<64x1xf32>
    %34 = vector.broadcast %33 : vector<64x1xf32> to vector<64x64xf32>
    %35 = arith.mulf %30, %34 : vector<64x64xf32>
    %36 = arith.truncf %35 : vector<64x64xf32> to vector<64x64xbf16>
    %cst_16 = arith.constant dense<0.000000e+00> : vector<64x8xf32>
    %37 = tpu.matmul %36, %24, %cst_16 {dimension_numbers = #tpu.dot_dimension_numbers<[1], [0], [0], [1], [0, 0, 1, 1], [], []>} : vector<64x64xbf16>, vector<64x8xbf16>, vector<64x8xf32> -> vector<64x8xf32>
    %38 = arith.truncf %37 : vector<64x8xf32> to vector<64x8xbf16>
    %c0_17 = arith.constant 0 : index
    %c8_18 = arith.constant 8 : index
    %39 = vector.load %arg2[%c0_17, %c8_18] : memref<64x32xbf16, #tpu.memory_space<vmem>>, vector<64x8xbf16>
    tpu.vector_store %arg2[%c0_17, %c8_18], %38 {strides = array<i32>} : memref<64x32xbf16, #tpu.memory_space<vmem>>, vector<64x8xbf16>,
    %c0_19 = arith.constant 0 : index
    %c16 = arith.constant 16 : index
    %40 = vector.load %arg1[%c0_19, %c16] : memref<64x96xbf16, #tpu.memory_space<vmem>>, vector<64x8xbf16>
    %cst_20 = arith.constant 3.535160e-01 : bf16
    %41 = vector.broadcast %cst_20 : bf16 to vector<64x8xbf16>
    %42 = arith.mulf %40, %41 : vector<64x8xbf16>
    %c0_21 = arith.constant 0 : index
    %c48 = arith.constant 48 : index
    %43 = vector.load %arg1[%c0_21, %c48] : memref<64x96xbf16, #tpu.memory_space<vmem>>, vector<64x8xbf16>
    %c0_22 = arith.constant 0 : index
    %c80 = arith.constant 80 : index
    %44 = vector.load %arg1[%c0_22, %c80] : memref<64x96xbf16, #tpu.memory_space<vmem>>, vector<64x8xbf16>
    %cst_23 = arith.constant dense<0.000000e+00> : vector<64x64xf32>
    %45 = tpu.matmul %42, %43, %cst_23 {dimension_numbers = #tpu.dot_dimension_numbers<[1], [1], [0], [0], [0, 0, 1, 0], [], []>} : vector<64x8xbf16>, vector<64x8xbf16>, vector<64x64xf32> -> vector<64x64xf32>
    %cst_24 = arith.constant dense<0xFF800000> : vector<64xf32>
    %46 = vector.multi_reduction <maximumf>, %45, %cst_24 [1] : vector<64x64xf32> to vector<64xf32>
    %47 = vector.shape_cast %46 : vector<64xf32> to vector<64x1xf32>
    %48 = vector.broadcast %47 : vector<64x1xf32> to vector<64x64xf32>
    %49 = arith.subf %45, %48 : vector<64x64xf32>
    %50 = math.exp %49 : vector<64x64xf32>
    %cst_25 = arith.constant dense<0.000000e+00> : vector<64xf32>
    %51 = vector.multi_reduction <add>, %50, %cst_25 [1] : vector<64x64xf32> to vector<64xf32>
    %52 = vector.shape_cast %51 : vector<64xf32> to vector<64x1xf32>
    %53 = tpu.reciprocal %52 {approx = true} : vector<64x1xf32> -> vector<64x1xf32>
    %54 = vector.broadcast %53 : vector<64x1xf32> to vector<64x64xf32>
    %55 = arith.mulf %50, %54 : vector<64x64xf32>
    %56 = arith.truncf %55 : vector<64x64xf32> to vector<64x64xbf16>
    %cst_26 = arith.constant dense<0.000000e+00> : vector<64x8xf32>
    %57 = tpu.matmul %56, %44, %cst_26 {dimension_numbers = #tpu.dot_dimension_numbers<[1], [0], [0], [1], [0, 0, 1, 1], [], []>} : vector<64x64xbf16>, vector<64x8xbf16>, vector<64x8xf32> -> vector<64x8xf32>
    %58 = arith.truncf %57 : vector<64x8xf32> to vector<64x8xbf16>
    %c0_27 = arith.constant 0 : index
    %c16_28 = arith.constant 16 : index
    %59 = vector.load %arg2[%c0_27, %c16_28] : memref<64x32xbf16, #tpu.memory_space<vmem>>, vector<64x8xbf16>
    tpu.vector_store %arg2[%c0_27, %c16_28], %58 {strides = array<i32>} : memref<64x32xbf16, #tpu.memory_space<vmem>>, vector<64x8xbf16>,
    %c0_29 = arith.constant 0 : index
    %c24 = arith.constant 24 : index
    %60 = vector.load %arg1[%c0_29, %c24] : memref<64x96xbf16, #tpu.memory_space<vmem>>, vector<64x8xbf16>
    %cst_30 = arith.constant 3.535160e-01 : bf16
    %61 = vector.broadcast %cst_30 : bf16 to vector<64x8xbf16>
    %62 = arith.mulf %60, %61 : vector<64x8xbf16>
    %c0_31 = arith.constant 0 : index
    %c56 = arith.constant 56 : index
    %63 = vector.load %arg1[%c0_31, %c56] : memref<64x96xbf16, #tpu.memory_space<vmem>>, vector<64x8xbf16>
    %c0_32 = arith.constant 0 : index
    %c88 = arith.constant 88 : index
    %64 = vector.load %arg1[%c0_32, %c88] : memref<64x96xbf16, #tpu.memory_space<vmem>>, vector<64x8xbf16>
    %cst_33 = arith.constant dense<0.000000e+00> : vector<64x64xf32>
    %65 = tpu.matmul %62, %63, %cst_33 {dimension_numbers = #tpu.dot_dimension_numbers<[1], [1], [0], [0], [0, 0, 1, 0], [], []>} : vector<64x8xbf16>, vector<64x8xbf16>, vector<64x64xf32> -> vector<64x64xf32>
    %cst_34 = arith.constant dense<0xFF800000> : vector<64xf32>
    %66 = vector.multi_reduction <maximumf>, %65, %cst_34 [1] : vector<64x64xf32> to vector<64xf32>
    %67 = vector.shape_cast %66 : vector<64xf32> to vector<64x1xf32>
    %68 = vector.broadcast %67 : vector<64x1xf32> to vector<64x64xf32>
    %69 = arith.subf %65, %68 : vector<64x64xf32>
    %70 = math.exp %69 : vector<64x64xf32>
    %cst_35 = arith.constant dense<0.000000e+00> : vector<64xf32>
    %71 = vector.multi_reduction <add>, %70, %cst_35 [1] : vector<64x64xf32> to vector<64xf32>
    %72 = vector.shape_cast %71 : vector<64xf32> to vector<64x1xf32>
    %73 = tpu.reciprocal %72 {approx = true} : vector<64x1xf32> -> vector<64x1xf32>
    %74 = vector.broadcast %73 : vector<64x1xf32> to vector<64x64xf32>
    %75 = arith.mulf %70, %74 : vector<64x64xf32>
    %76 = arith.truncf %75 : vector<64x64xf32> to vector<64x64xbf16>
    %cst_36 = arith.constant dense<0.000000e+00> : vector<64x8xf32>
    %77 = tpu.matmul %76, %64, %cst_36 {dimension_numbers = #tpu.dot_dimension_numbers<[1], [0], [0], [1], [0, 0, 1, 1], [], []>} : vector<64x64xbf16>, vector<64x8xbf16>, vector<64x8xf32> -> vector<64x8xf32>
    %78 = arith.truncf %77 : vector<64x8xf32> to vector<64x8xbf16>
    %c0_37 = arith.constant 0 : index
    %c24_38 = arith.constant 24 : index
    %79 = vector.load %arg2[%c0_37, %c24_38] : memref<64x32xbf16, #tpu.memory_space<vmem>>, vector<64x8xbf16>
    tpu.vector_store %arg2[%c0_37, %c24_38], %78 {strides = array<i32>} : memref<64x32xbf16, #tpu.memory_space<vmem>>, vector<64x8xbf16>,
    return
  }
  func.func @transform_0(%arg0: i32) -> (i32, i32) {
    %c0_i32 = arith.constant 0 : i32
    %c0_i32_0 = arith.constant 0 : i32
    return %arg0, %c0_i32 : i32, i32
  }
  func.func @transform_1(%arg0: i32) -> (i32, i32) {
    %c0_i32 = arith.constant 0 : i32
    %c0_i32_0 = arith.constant 0 : i32
    return %arg0, %c0_i32 : i32, i32
  }
}

</mosaic_0001>

<llo_original>
// kernel: attention_forward.3
$region0: #{attention_forward.3}
  #allocation0 [shape = 'u32[]', space=smem, size = 0x4, offset = 0x4, fixed_abs, tag = 'smem constant byte address 0x4 - core index']
  #allocation1 [shape = 'u32[72,128]{1,0:T(1,128)}', space=vmem, size = 0x9000, scoped, tag = 'internal scratch']
  %s0 = inlined_call_operand.vmem [shape: bf16[128,32], index: 0, kind: input, shape index: {}]
  %s1 = inlined_call_operand.vmem [shape: bf16[32,96], index: 1, kind: input, shape index: {}]
  %s2 = inlined_call_operand.vmem [shape: f32[1,96], index: 2, kind: input, shape index: {}]
  %s3 = inlined_call_operand.vmem [shape: bf16[128,96], index: 3, kind: output, shape index: {}]
  %s4 = sld [smem:[#allocation0]]
  $region22: #{attention_forward.3} parent=0
    _
  %s6 = ssub.s32 1, %s4
  %s7 = scalar_select 0, %s6, %s4
  // Predicated region
  $region2: #{attention_forward.3} parent=0 // pred_check
    _
  $region3: #{attention_forward.3} parent=0 // pred_check_branch
    %9 = sbr.rel (0) target = $region5
  $region4: #{attention_forward.3} parent=0 // pred_region
    _
  $region5: #{attention_forward.3} parent=0 // pred_fallthru
    _
  // Predicated region
  $region6: #{attention_forward.3} parent=0 // pred_check
    _
  $region7: #{attention_forward.3} parent=0 // pred_check_branch
    %11 = sbr.rel (0) target = $region9
  $region8: #{attention_forward.3} parent=0 // pred_region
    _
  $region9: #{attention_forward.3} parent=0 // pred_fallthru
    _
  // Predicated region
  $region10: #{attention_forward.3} parent=0 // pred_check
    _
  $region11: #{attention_forward.3} parent=0 // pred_check_branch
    %13 = sbr.rel (0) target = $region13
  $region12: #{attention_forward.3} parent=0 // pred_region
    _
  $region13: #{attention_forward.3} parent=0 // pred_fallthru
    _
  %v15 = vld [vmem:[%s0] sm:$0xf]
  %v16 = vld [vmem:[%s0 + $0x4] sm:$0xf]
  %v17 = vld [vmem:[%s0 + $0x8] sm:$0xf]
  %v18 = vld [vmem:[%s0 + $0xc] sm:$0xf]
  %v19 = vld [vmem:[%s0 + $0x10] sm:$0xf]
  %v20 = vld [vmem:[%s0 + $0x14] sm:$0xf]
  %v21 = vld [vmem:[%s0 + $0x18] sm:$0xf]
  %v22 = vld [vmem:[%s0 + $0x1c] sm:$0xf]
  %v23 = vld [vmem:[%s0 + $0x20] sm:$0xf]
  %v24 = vld [vmem:[%s0 + $0x24] sm:$0xf]
  %v25 = vld [vmem:[%s0 + $0x28] sm:$0xf]
  %v26 = vld [vmem:[%s0 + $0x2c] sm:$0xf]
  %v27 = vld [vmem:[%s0 + $0x30] sm:$0xf]
  %v28 = vld [vmem:[%s0 + $0x34] sm:$0xf]
  %v29 = vld [vmem:[%s0 + $0x38] sm:$0xf]
  %v30 = vld [vmem:[%s0 + $0x3c] sm:$0xf]
  %v31 = vld [vmem:[%s1] sm:$0xf]
  %v32 = vld [vmem:[%s1 + $0x4] sm:$0xf]
  %v33 = vld [vmem:[%s1 + $0x8] sm:$0xf]
  %v34 = vld [vmem:[%s1 + $0xc] sm:$0xf]
  %v35 = vld [vmem:[%s2] sm:$0x1]
  %v37 = vperm.slane %v35, 0
  %v55 = vunpack.c.l.b16 %v15
  %v56 = vunpack.c.l.b16 %v16
  %v57 = vunpack.c.l.b16 %v17
  %v58 = vunpack.c.l.b16 %v18
  %v59 = vunpack.c.l.b16 %v19
  %v60 = vunpack.c.l.b16 %v20
  %v61 = vunpack.c.l.b16 %v21
  %v62 = vunpack.c.l.b16 %v22
  %v63 = vunpack.c.l.b16 %v23
  %v64 = vunpack.c.l.b16 %v24
  %v65 = vunpack.c.l.b16 %v25
  %v66 = vunpack.c.l.b16 %v26
  %v67 = vunpack.c.l.b16 %v27
  %v68 = vunpack.c.l.b16 %v28
  %v69 = vunpack.c.l.b16 %v29
  %v70 = vunpack.c.l.b16 %v30
  %v71 = vpack.c.b16 %v56, %v55
  %v72 = vpack.c.b16 %v58, %v57
  %v73 = vpack.c.b16 %v60, %v59
  %v74 = vpack.c.b16 %v62, %v61
  %v75 = vpack.c.b16 %v64, %v63
  %v76 = vpack.c.b16 %v66, %v65
  %v77 = vpack.c.b16 %v68, %v67
  %v78 = vpack.c.b16 %v70, %v69
  %v83 = vunpack.c.l.b16 %v31
  %v84 = vunpack.c.l.b16 %v32
  %v85 = vunpack.c.l.b16 %v33
  %v86 = vunpack.c.l.b16 %v34
  %v87 = vpack.c.b16 %v84, %v83
  %v88 = vpack.c.b16 %v86, %v85
  %vm91 = vcmask 261120
  %v93 = vsel %vm91, %v71, 0
  %v96 = vsel %vm91, %v72, 0
  %v99 = vsel %vm91, %v73, 0
  %v102 = vsel %vm91, %v74, 0
  %v105 = vsel %vm91, %v75, 0
  %v108 = vsel %vm91, %v76, 0
  %v111 = vsel %vm91, %v77, 0
  %v114 = vsel %vm91, %v78, 0
  %116 = vmatpush.bf16.msra.mxu0 0
  %117 = vmatpush.bf16.msra.mxu0 0
  %118 = vmatpush.bf16.msra.mxu0 0
  %119 = vmatpush.bf16.msra.mxu0 0
  %120 = vmatpush.bf16.msra.mxu0 0
  %121 = vmatpush.bf16.msra.mxu0 0
  %122 = vmatpush.bf16.msra.mxu0 %v88
  %123 = vmatpush.bf16.msra.mxu0 %v87
  %124 = vmatmul.bf16.gmra.mxu0 %v93
  %v125 = vpop.f32.mrf.mxu0
  %v126 = vadd.f32 %v37, %v125
  %v127 = vpop.f32.mrf.mxu0
  %v128 = vadd.f32 %v37, %v127
  %129 = vmatmul.bf16.gmra.mxu0 %v96
  %v130 = vpop.f32.mrf.mxu0
  %v131 = vadd.f32 %v37, %v130
  %v132 = vpop.f32.mrf.mxu0
  %v133 = vadd.f32 %v37, %v132
  %134 = vmatmul.bf16.gmra.mxu0 %v99
  %v135 = vpop.f32.mrf.mxu0
  %v136 = vadd.f32 %v37, %v135
  %v137 = vpop.f32.mrf.mxu0
  %v138 = vadd.f32 %v37, %v137
  %139 = vmatmul.bf16.gmra.mxu0 %v102
  %v140 = vpop.f32.mrf.mxu0
  %v141 = vadd.f32 %v37, %v140
  %v142 = vpop.f32.mrf.mxu0
  %v143 = vadd.f32 %v37, %v142
  %144 = vmatmul.bf16.gmra.mxu0 %v105
  %v145 = vpop.f32.mrf.mxu0
  %v146 = vadd.f32 %v37, %v145
  %v147 = vpop.f32.mrf.mxu0
  %v148 = vadd.f32 %v37, %v147
  %149 = vmatmul.bf16.gmra.mxu0 %v108
  %v150 = vpop.f32.mrf.mxu0
  %v151 = vadd.f32 %v37, %v150
  %v152 = vpop.f32.mrf.mxu0
  %v153 = vadd.f32 %v37, %v152
  %154 = vmatmul.bf16.gmra.mxu0 %v111
  %v155 = vpop.f32.mrf.mxu0
  %v156 = vadd.f32 %v37, %v155
  %v157 = vpop.f32.mrf.mxu0
  %v158 = vadd.f32 %v37, %v157
  %159 = vmatmul.bf16.gmra.mxu0 %v114
  %v160 = vpop.f32.mrf.mxu0
  %v161 = vadd.f32 %v37, %v160
  %v162 = vpop.f32.mrf.mxu0
  %v163 = vadd.f32 %v37, %v162
  %164 = vdwg.mxu0
  %v165 = vpack.c.bf16 %v126, %v126
  %v166 = vpack.c.bf16 %v128, %v128
  %v167 = vpack.c.bf16 %v131, %v131
  %v168 = vpack.c.bf16 %v133, %v133
  %v169 = vpack.c.bf16 %v136, %v136
  %v170 = vpack.c.bf16 %v138, %v138
  %v171 = vpack.c.bf16 %v141, %v141
  %v172 = vpack.c.bf16 %v143, %v143
  %v173 = vpack.c.bf16 %v146, %v146
  %v174 = vpack.c.bf16 %v148, %v148
  %v175 = vpack.c.bf16 %v151, %v151
  %v176 = vpack.c.bf16 %v153, %v153
  %v177 = vpack.c.bf16 %v156, %v156
  %v178 = vpack.c.bf16 %v158, %v158
  %v179 = vpack.c.bf16 %v161, %v161
  %v180 = vpack.c.bf16 %v163, %v163
  %vm181 = vcmask 781312
  %182 = vst.msk [vmem:[%s3] sm:$0xf] %vm181, %v165
  %183 = vst.msk [vmem:[%s3 + $0x4] sm:$0xf] %vm181, %v166
  %184 = vst.msk [vmem:[%s3 + $0x8] sm:$0xf] %vm181, %v167
  %185 = vst.msk [vmem:[%s3 + $0xc] sm:$0xf] %vm181, %v168
  %186 = vst.msk [vmem:[%s3 + $0x10] sm:$0xf] %vm181, %v169
  %187 = vst.msk [vmem:[%s3 + $0x14] sm:$0xf] %vm181, %v170
  %188 = vst.msk [vmem:[%s3 + $0x18] sm:$0xf] %vm181, %v171
  %189 = vst.msk [vmem:[%s3 + $0x1c] sm:$0xf] %vm181, %v172
  %190 = vst.msk [vmem:[%s3 + $0x20] sm:$0xf] %vm181, %v173
  %191 = vst.msk [vmem:[%s3 + $0x24] sm:$0xf] %vm181, %v174
  %192 = vst.msk [vmem:[%s3 + $0x28] sm:$0xf] %vm181, %v175
  %193 = vst.msk [vmem:[%s3 + $0x2c] sm:$0xf] %vm181, %v176
  %194 = vst.msk [vmem:[%s3 + $0x30] sm:$0xf] %vm181, %v177
  %195 = vst.msk [vmem:[%s3 + $0x34] sm:$0xf] %vm181, %v178
  %196 = vst.msk [vmem:[%s3 + $0x38] sm:$0xf] %vm181, %v179
  %197 = vst.msk [vmem:[%s3 + $0x3c] sm:$0xf] %vm181, %v180
  // Predicated region
  $region14: #{attention_forward.3} parent=0 // pred_check
    _
  $region15: #{attention_forward.3} parent=0 // pred_check_branch
    %199 = sbr.rel (0) target = $region17
  $region16: #{attention_forward.3} parent=0 // pred_region
    _
  $region17: #{attention_forward.3} parent=0 // pred_fallthru
    _
  // Predicated region
  $region18: #{attention_forward.3} parent=0 // pred_check
    _
  $region19: #{attention_forward.3} parent=0 // pred_check_branch
    %201 = sbr.rel (0) target = $region21
  $region20: #{attention_forward.3} parent=0 // pred_region
    _
  $region21: #{attention_forward.3} parent=0 // pred_fallthru
    _

// kernel: attention_forward.5
$region0: #{attention_forward.5}
  #allocation0 [shape = 'u32[]', space=smem, size = 0x4, offset = 0x4, fixed_abs, tag = 'smem constant byte address 0x4 - core index']
  #allocation1 [shape = 'u32[72,128]{1,0:T(1,128)}', space=vmem, size = 0x9000, scoped, tag = 'internal scratch']
  %s0 = inlined_call_operand.vmem [shape: bf16[128,32], index: 0, kind: input, shape index: {}]
  %s1 = inlined_call_operand.vmem [shape: bf16[32,32], index: 1, kind: input, shape index: {}]
  %s2 = inlined_call_operand.vmem [shape: f32[1,32], index: 2, kind: input, shape index: {}]
  %s3 = inlined_call_operand.hbm [shape: f32[128,32], index: 3, kind: output, shape index: {}]
  %s4 = sld [smem:[#allocation0]]
  $region22: #{attention_forward.5} parent=0
    _
  %s6 = ssub.s32 1, %s4
  %s7 = scalar_select 0, %s6, %s4
  $region1: #{attention_forward.5} parent=0
    #allocation2 [shape = 'u8[65536]{0}', space=vmem, size = 0x10000, scoped, tag = 'output window, operand 0, single buffered']
    #allocation3 [shape = 's32[1]{0}', space=sflag, size = 0x4, scoped, tag = 'scoped memory for attention_forward.5']
    %8 = vsyncpa [#allocation3], 0
    // Predicated region
    $region2: #{attention_forward.5} parent=1 // pred_check
      _
    $region3: #{attention_forward.5} parent=1 // pred_check_branch
      %10 = sbr.rel (0) target = $region5
    $region4: #{attention_forward.5} parent=1 // pred_region
      _
    $region5: #{attention_forward.5} parent=1 // pred_fallthru
      _
    // Predicated region
    $region6: #{attention_forward.5} parent=1 // pred_check
      _
    $region7: #{attention_forward.5} parent=1 // pred_check_branch
      %12 = sbr.rel (0) target = $region9
    $region8: #{attention_forward.5} parent=1 // pred_region
      _
    $region9: #{attention_forward.5} parent=1 // pred_fallthru
      _
    // Predicated region
    $region10: #{attention_forward.5} parent=1 // pred_check
      _
    $region11: #{attention_forward.5} parent=1 // pred_check_branch
      %14 = sbr.rel (0) target = $region13
    $region12: #{attention_forward.5} parent=1 // pred_region
      _
    $region13: #{attention_forward.5} parent=1 // pred_fallthru
      _
    %v16 = vld [vmem:[%s0] sm:$0xf]
    %v17 = vld [vmem:[%s0 + $0x4] sm:$0xf]
    %v18 = vld [vmem:[%s0 + $0x8] sm:$0xf]
    %v19 = vld [vmem:[%s0 + $0xc] sm:$0xf]
    %v20 = vld [vmem:[%s0 + $0x10] sm:$0xf]
    %v21 = vld [vmem:[%s0 + $0x14] sm:$0xf]
    %v22 = vld [vmem:[%s0 + $0x18] sm:$0xf]
    %v23 = vld [vmem:[%s0 + $0x1c] sm:$0xf]
    %v24 = vld [vmem:[%s0 + $0x20] sm:$0xf]
    %v25 = vld [vmem:[%s0 + $0x24] sm:$0xf]
    %v26 = vld [vmem:[%s0 + $0x28] sm:$0xf]
    %v27 = vld [vmem:[%s0 + $0x2c] sm:$0xf]
    %v28 = vld [vmem:[%s0 + $0x30] sm:$0xf]
    %v29 = vld [vmem:[%s0 + $0x34] sm:$0xf]
    %v30 = vld [vmem:[%s0 + $0x38] sm:$0xf]
    %v31 = vld [vmem:[%s0 + $0x3c] sm:$0xf]
    %v32 = vld [vmem:[%s1] sm:$0xf]
    %v33 = vld [vmem:[%s1 + $0x4] sm:$0xf]
    %v34 = vld [vmem:[%s1 + $0x8] sm:$0xf]
    %v35 = vld [vmem:[%s1 + $0xc] sm:$0xf]
    %v36 = vld [vmem:[%s2] sm:$0x1]
    %v38 = vperm.slane %v36, 0
    %v56 = vunpack.c.l.b16 %v16
    %v57 = vunpack.c.l.b16 %v17
    %v58 = vunpack.c.l.b16 %v18
    %v59 = vunpack.c.l.b16 %v19
    %v60 = vunpack.c.l.b16 %v20
    %v61 = vunpack.c.l.b16 %v21
    %v62 = vunpack.c.l.b16 %v22
    %v63 = vunpack.c.l.b16 %v23
    %v64 = vunpack.c.l.b16 %v24
    %v65 = vunpack.c.l.b16 %v25
    %v66 = vunpack.c.l.b16 %v26
    %v67 = vunpack.c.l.b16 %v27
    %v68 = vunpack.c.l.b16 %v28
    %v69 = vunpack.c.l.b16 %v29
    %v70 = vunpack.c.l.b16 %v30
    %v71 = vunpack.c.l.b16 %v31
    %v72 = vpack.c.b16 %v57, %v56
    %v73 = vpack.c.b16 %v59, %v58
    %v74 = vpack.c.b16 %v61, %v60
    %v75 = vpack.c.b16 %v63, %v62
    %v76 = vpack.c.b16 %v65, %v64
    %v77 = vpack.c.b16 %v67, %v66
    %v78 = vpack.c.b16 %v69, %v68
    %v79 = vpack.c.b16 %v71, %v70
    %v84 = vunpack.c.l.b16 %v32
    %v85 = vunpack.c.l.b16 %v33
    %v86 = vunpack.c.l.b16 %v34
    %v87 = vunpack.c.l.b16 %v35
    %v88 = vpack.c.b16 %v85, %v84
    %v89 = vpack.c.b16 %v87, %v86
    %vm92 = vcmask 261120
    %v94 = vsel %vm92, %v72, 0
    %v97 = vsel %vm92, %v73, 0
    %v100 = vsel %vm92, %v74, 0
    %v103 = vsel %vm92, %v75, 0
    %v106 = vsel %vm92, %v76, 0
    %v109 = vsel %vm92, %v77, 0
    %v112 = vsel %vm92, %v78, 0
    %v115 = vsel %vm92, %v79, 0
    %117 = vmatpush.bf16.msra.mxu0 0
    %118 = vmatpush.bf16.msra.mxu0 0
    %119 = vmatpush.bf16.msra.mxu0 0
    %120 = vmatpush.bf16.msra.mxu0 0
    %121 = vmatpush.bf16.msra.mxu0 0
    %122 = vmatpush.bf16.msra.mxu0 0
    %123 = vmatpush.bf16.msra.mxu0 %v89
    %124 = vmatpush.bf16.msra.mxu0 %v88
    %125 = vmatmul.bf16.gmra.mxu0 %v94
    %v126 = vpop.f32.mrf.mxu0
    %v127 = vadd.f32 %v38, %v126
    %v128 = vpop.f32.mrf.mxu0
    %v129 = vadd.f32 %v38, %v128
    %130 = vmatmul.bf16.gmra.mxu0 %v97
    %v131 = vpop.f32.mrf.mxu0
    %v132 = vadd.f32 %v38, %v131
    %v133 = vpop.f32.mrf.mxu0
    %v134 = vadd.f32 %v38, %v133
    %135 = vmatmul.bf16.gmra.mxu0 %v100
    %v136 = vpop.f32.mrf.mxu0
    %v137 = vadd.f32 %v38, %v136
    %v138 = vpop.f32.mrf.mxu0
    %v139 = vadd.f32 %v38, %v138
    %140 = vmatmul.bf16.gmra.mxu0 %v103
    %v141 = vpop.f32.mrf.mxu0
    %v142 = vadd.f32 %v38, %v141
    %v143 = vpop.f32.mrf.mxu0
    %v144 = vadd.f32 %v38, %v143
    %145 = vmatmul.bf16.gmra.mxu0 %v106
    %v146 = vpop.f32.mrf.mxu0
    %v147 = vadd.f32 %v38, %v146
    %v148 = vpop.f32.mrf.mxu0
    %v149 = vadd.f32 %v38, %v148
    %150 = vmatmul.bf16.gmra.mxu0 %v109
    %v151 = vpop.f32.mrf.mxu0
    %v152 = vadd.f32 %v38, %v151
    %v153 = vpop.f32.mrf.mxu0
    %v154 = vadd.f32 %v38, %v153
    %155 = vmatmul.bf16.gmra.mxu0 %v112
    %v156 = vpop.f32.mrf.mxu0
    %v157 = vadd.f32 %v38, %v156
    %v158 = vpop.f32.mrf.mxu0
    %v159 = vadd.f32 %v38, %v158
    %160 = vmatmul.bf16.gmra.mxu0 %v115
    %v161 = vpop.f32.mrf.mxu0
    %v162 = vadd.f32 %v38, %v161
    %v163 = vpop.f32.mrf.mxu0
    %v164 = vadd.f32 %v38, %v163
    %165 = vdwg.mxu0
    %166 = vst.msk [vmem:[#allocation2] sm:$0xff] %vm92, %v127
    %167 = vst.msk [vmem:[#allocation2 + $0x8] sm:$0xff] %vm92, %v129
    %168 = vst.msk [vmem:[#allocation2 + $0x10] sm:$0xff] %vm92, %v132
    %169 = vst.msk [vmem:[#allocation2 + $0x18] sm:$0xff] %vm92, %v134
    %170 = vst.msk [vmem:[#allocation2 + $0x20] sm:$0xff] %vm92, %v137
    %171 = vst.msk [vmem:[#allocation2 + $0x28] sm:$0xff] %vm92, %v139
    %172 = vst.msk [vmem:[#allocation2 + $0x30] sm:$0xff] %vm92, %v142
    %173 = vst.msk [vmem:[#allocation2 + $0x38] sm:$0xff] %vm92, %v144
    %174 = vst.msk [vmem:[#allocation2 + $0x40] sm:$0xff] %vm92, %v147
    %175 = vst.msk [vmem:[#allocation2 + $0x48] sm:$0xff] %vm92, %v149
    %176 = vst.msk [vmem:[#allocation2 + $0x50] sm:$0xff] %vm92, %v152
    %177 = vst.msk [vmem:[#allocation2 + $0x58] sm:$0xff] %vm92, %v154
    %178 = vst.msk [vmem:[#allocation2 + $0x60] sm:$0xff] %vm92, %v157
    %179 = vst.msk [vmem:[#allocation2 + $0x68] sm:$0xff] %vm92, %v159
    %180 = vst.msk [vmem:[#allocation2 + $0x70] sm:$0xff] %vm92, %v162
    %181 = vst.msk [vmem:[#allocation2 + $0x78] sm:$0xff] %vm92, %v164
    // Predicated region
    $region14: #{attention_forward.5} parent=1 // pred_check
      _
    $region15: #{attention_forward.5} parent=1 // pred_check_branch
      %183 = sbr.rel (0) target = $region17
    $region16: #{attention_forward.5} parent=1 // pred_region
      %185 = vsyncadd [#allocation3], 0
      %s186 = sshll.u32 [#allocation2], 4
      %s187 = int_to_ptr.vmem [resolvable:$true] %s186
      %s188 = sshll.u32 %s3, 4
      %s189 = int_to_ptr.hbm [resolvable:$true] %s188
      %194 = dma.vmem_to_hbm [thread:$0]  %s187, 2048, %s189, [#allocation3], 128, 128, 8
    $region17: #{attention_forward.5} parent=1 // pred_fallthru
      _
    // Predicated region
    $region18: #{attention_forward.5} parent=1 // pred_check
      _
    $region19: #{attention_forward.5} parent=1 // pred_check_branch
      %196 = sbr.rel (0) target = $region21
    $region20: #{attention_forward.5} parent=1 // pred_region
      %198 = dma.done [#allocation3], 2048
    $region21: #{attention_forward.5} parent=1 // pred_fallthru
      _
    %199 = vsyncpa [#allocation3], 1

// kernel: attention_forward.4
$region0: #{attention_forward.4}
  #allocation0 [shape = 'u32[]', space=smem, size = 0x4, offset = 0x4, fixed_abs, tag = 'smem constant byte address 0x4 - core index']
  #allocation1 [shape = 'u32[72,128]{1,0:T(1,128)}', space=vmem, size = 0x9000, scoped, tag = 'internal scratch']
  %s0 = inlined_call_operand.vmem [shape: bf16[128,96], index: 0, kind: input, shape index: {}]
  %s1 = inlined_call_operand.vmem [shape: bf16[128,32], index: 1, kind: output, shape index: {}]
  %s2 = sld [smem:[#allocation0]]
  $region37: #{attention_forward.4} parent=0
    _
  %s4 = ssub.s32 1, %s2
  %s5 = scalar_select 0, %s4, %s2
  loop: start=0, step=1, limit=4
  $region2: #{attention_forward.4} parent=0 // loop_pre_header
    _
  $region3: #{attention_forward.4} parent=0 // loop_header
    %s7 = sphi 0, %s11
    %p8 = scmp.ge.s32.totalorder %s7, 4
    %s17 = sphi 0, %s19
    %s20 = sphi 0, %s17
    %s21 = sphi 0, %s20
    %s37 = sphi 0, %s21
    %s43 = sphi 0, %s45
    %s46 = sphi 0, %s43
    %s47 = sphi 0, %s46
    %s63 = sphi 0, %s47
  $region4: #{attention_forward.4} parent=0 // loop_header_branch
    %10 = sbr.rel (%p8) target = $region8
  $region5: #{attention_forward.4} parent=0 // loop_body
    %s12 = ssub.s32 %s7, 1
    %s13 = ssub.s32 %s7, 2
    %s14 = sadd.s32 %s7, 1
    %s15 = ssub.s32 %s7, %s14
    %p16 = scmp.eq.s32.totalorder %s15, 0
    %s18 = sadd.s32 %s17, 1
    %s19 = scalar_select %p16, %s17, %s18
    %p22 = pneg %p16
    %p23 = scmp.eq.s32.totalorder %s7, 1
    %p24 = por %p22, %p23
    %p25 = scmp.ne.s32.totalorder %s17, %s20
    %p26 = scmp.eq.s32.totalorder %s7, 0
    %p27 = por %p25, %p26
    %p28 = scmp.ne.s32.totalorder %s17, %s20
    %p29 = scmp.eq.s32.totalorder %s12, 1
    %p30 = por %p28, %p29
    %p31 = scmp.ne.s32.totalorder %s20, %s21
    %p32 = scmp.eq.s32.totalorder %s12, 0
    %p33 = por %p31, %p32
    %p34 = scmp.ne.s32.totalorder %s20, %s21
    %p35 = scmp.eq.s32.totalorder %s13, 1
    %p36 = por %p34, %p35
    %p38 = scmp.ne.s32.totalorder %s21, %s37
    %p39 = scmp.eq.s32.totalorder %s13, 0
    %p40 = por %p38, %p39
    %s41 = ssub.s32 %s7, %s14
    %p42 = scmp.eq.s32.totalorder %s41, 0
    %s44 = sadd.s32 %s43, 1
    %s45 = scalar_select %p42, %s43, %s44
    %p48 = pneg %p42
    %p49 = scmp.eq.s32.totalorder %s7, 1
    %p50 = por %p48, %p49
    %p51 = scmp.ne.s32.totalorder %s43, %s46
    %p52 = scmp.eq.s32.totalorder %s7, 0
    %p53 = por %p51, %p52
    %p54 = scmp.ne.s32.totalorder %s43, %s46
    %p55 = scmp.eq.s32.totalorder %s12, 1
    %p56 = por %p54, %p55
    %p57 = scmp.ne.s32.totalorder %s46, %s47
    %p58 = scmp.eq.s32.totalorder %s12, 0
    %p59 = por %p57, %p58
    %p60 = scmp.ne.s32.totalorder %s46, %s47
    %p61 = scmp.eq.s32.totalorder %s13, 1
    %p62 = por %p60, %p61
    %p64 = scmp.ne.s32.totalorder %s47, %s63
    %p65 = scmp.eq.s32.totalorder %s13, 0
    %p66 = por %p64, %p65
    %p67 = scmp.le.s32.totalorder 1, %s7
    %p68 = scmp.lt.s32.totalorder %s7, 3
    %p69 = pnand %p67, %p68
    %p70 = pneg %p69
    // Predicated region
    $region9: #{attention_forward.4} parent=5 // pred_check
      _
    $region10: #{attention_forward.4} parent=5 // pred_check_branch
      %72 = sbr.rel (%p69) target = $region12
    $region11: #{attention_forward.4} parent=5 // pred_region
      %s73 = ssub.s32 %s7, 1
    $region12: #{attention_forward.4} parent=5 // pred_fallthru
      _
    %p74 = scmp.lt.s32.totalorder %s7, 2
    // Predicated region
    $region13: #{attention_forward.4} parent=5 // pred_check
      %p75 = pneg %p74
    $region14: #{attention_forward.4} parent=5 // pred_check_branch
      %77 = sbr.rel (%p75) target = $region16
    $region15: #{attention_forward.4} parent=5 // pred_region
      // Predicated region
      $region17: #{attention_forward.4} parent=15 // pred_check
        %p78 = pneg %p27
      $region18: #{attention_forward.4} parent=15 // pred_check_branch
        %80 = sbr.rel (%p78) target = $region20
      $region19: #{attention_forward.4} parent=15 // pred_region
        %s81 = smul.u32 8, %s7
        %p82 = scmp.lt.s32.totalorder %s81, 15
        %s83 = scalar_select %p82, %s81, 15
        %s84 = smul.addr %s83, 4
        %s85 = scalar_lea.vmem %s0, %s84
        %s86 = smul.u32 8, %s7
      $region20: #{attention_forward.4} parent=15 // pred_fallthru
        _
    $region16: #{attention_forward.4} parent=5 // pred_fallthru
      _
    %p87 = scmp.le.s32.totalorder 1, %s7
    %p88 = scmp.lt.s32.totalorder %s7, 3
    %p89 = pnand %p87, %p88
    %p90 = pneg %p89
    // Predicated region
    $region21: #{attention_forward.4} parent=5 // pred_check
      _
    $region22: #{attention_forward.4} parent=5 // pred_check_branch
      %92 = sbr.rel (%p89) target = $region24
    $region23: #{attention_forward.4} parent=5 // pred_region
      %s93 = ssub.s32 %s7, 1
      %s94 = smul.u32 8, %s12
      %p95 = scmp.lt.s32.totalorder %s94, 15
      %s96 = scalar_select %p95, %s94, 15
      %s97 = smul.addr %s96, 4
      %s98 = scalar_lea.vmem %s0, %s97
      %p99 = pneg %p33
      %p100 = pneg %p30
      %p101 = pneg %p59
      %p102 = pneg %p56
      %s103 = smul.u32 8, %s12
      %p104 = scmp.lt.s32.totalorder %s103, 15
      %s105 = scalar_select %p104, %s103, 15
      %s106 = smul.addr %s105, 4
      %s107 = scalar_lea.vmem %s1, %s106
      %s108 = smul.u32 8, %s12
      %p109 = scmp.lt.s32.totalorder %s108, 15
      %s110 = scalar_select %p109, %s108, 15
      %s111 = smul.addr %s110, 4
      %s112 = scalar_lea.vmem %s0, %s111
      %s113 = smul.u32 8, %s12
      %s114 = smul.u32 8, %s12
      %p115 = scmp.lt.s32.totalorder %s114, 15
      %s116 = scalar_select %p115, %s114, 15
      %s117 = smul.addr %s116, 4
      %s118 = scalar_lea.vmem %s1, %s117
      %s119 = smul.u32 8, %s12
      %v121 = vld [vmem:[%s112] sm:$0xf]
      %v122 = vld [vmem:[%s112 + $0x4] sm:$0xf]
      %v123 = vld [vmem:[%s112 + $0x8] sm:$0xf]
      %v124 = vld [vmem:[%s112 + $0xc] sm:$0xf]
      %v125 = vld [vmem:[%s112 + $0x10] sm:$0xf]
      %v126 = vld [vmem:[%s112 + $0x14] sm:$0xf]
      %v127 = vld [vmem:[%s112 + $0x18] sm:$0xf]
      %v128 = vld [vmem:[%s112 + $0x1c] sm:$0xf]
      %v129 = vunpack.c.l.bf16 %v121
      %v130 = vunpack.c.l.bf16 %v122
      %v131 = vunpack.c.l.bf16 %v123
      %v132 = vunpack.c.l.bf16 %v124
      %v133 = vunpack.c.l.bf16 %v125
      %v134 = vunpack.c.l.bf16 %v126
      %v135 = vunpack.c.l.bf16 %v127
      %v136 = vunpack.c.l.bf16 %v128
      %v137 = vmul.f32 %v129, 0.35351563
      %v138 = vmul.f32 %v130, 0.35351563
      %v139 = vmul.f32 %v131, 0.35351563
      %v140 = vmul.f32 %v132, 0.35351563
      %v141 = vmul.f32 %v133, 0.35351563
      %v142 = vmul.f32 %v134, 0.35351563
      %v143 = vmul.f32 %v135, 0.35351563
      %v144 = vmul.f32 %v136, 0.35351563
      %v145 = vpack.c.bf16 %v138, %v137
      %v146 = vpack.c.bf16 %v140, %v139
      %v147 = vpack.c.bf16 %v142, %v141
      %v148 = vpack.c.bf16 %v144, %v143
      %v157 = vunpack.c.l.b16 %v121
      %v158 = vunpack.c.l.b16 %v122
      %v159 = vunpack.c.l.b16 %v123
      %v160 = vunpack.c.l.b16 %v124
      %v161 = vunpack.c.l.b16 %v125
      %v162 = vunpack.c.l.b16 %v126
      %v163 = vunpack.c.l.b16 %v127
      %v164 = vunpack.c.l.b16 %v128
      %v165 = vpack.c.b16 %v158, %v157
      %v166 = vpack.c.b16 %v160, %v159
      %v167 = vpack.c.b16 %v162, %v161
      %v168 = vpack.c.b16 %v164, %v163
      %169 = vrot.lane.b32.xlu0 %v165, 96
      %v170 = vpop.permute.xlu0 %169
      %171 = vrot.lane.b32.xlu0 %v166, 96
      %v172 = vpop.permute.xlu0 %171
      %173 = vrot.lane.b32.xlu0 %v167, 96
      %v174 = vpop.permute.xlu0 %173
      %175 = vrot.lane.b32.xlu0 %v168, 96
      %v176 = vpop.permute.xlu0 %175
      %vm177 = vcmask 64512
      %v179 = vsel %vm177, %v145, 0
      %v182 = vsel %vm177, %v146, 0
      %v185 = vsel %vm177, %v147, 0
      %v188 = vsel %vm177, %v148, 0
      %v191 = vsel %vm177, %v170, 0
      %v194 = vsel %vm177, %v172, 0
      %v197 = vsel %vm177, %v174, 0
      %v200 = vsel %vm177, %v176, 0
      %202 = vmatpush.bf16.xpose.msra.mxu0 0
      %203 = vmatpush.bf16.xpose.msra.mxu0 0
      %204 = vmatpush.bf16.xpose.msra.mxu0 0
      %205 = vmatpush.bf16.xpose.msra.mxu0 0
      %206 = vmatpush.bf16.xpose.msra.mxu0 %v200
      %207 = vmatpush.bf16.xpose.msra.mxu0 %v197
      %208 = vmatpush.bf16.xpose.msra.mxu0 %v194
      %209 = vmatpush.bf16.xpose.msra.mxu0 %v191
      %210 = vmatmul.bf16.gmra.mxu0 %v179
      %v211 = vpop.f32.mrf.mxu0
      %v212 = vadd.f32 0.0, %v211
      %v213 = vpop.f32.mrf.mxu0
      %v214 = vadd.f32 0.0, %v213
      %215 = vmatmul.bf16.gmra.mxu0 %v182
      %v216 = vpop.f32.mrf.mxu0
      %v217 = vadd.f32 0.0, %v216
      %v218 = vpop.f32.mrf.mxu0
      %v219 = vadd.f32 0.0, %v218
      %220 = vmatmul.bf16.gmra.mxu0 %v185
      %v221 = vpop.f32.mrf.mxu0
      %v222 = vadd.f32 0.0, %v221
      %v223 = vpop.f32.mrf.mxu0
      %v224 = vadd.f32 0.0, %v223
      %225 = vmatmul.bf16.gmra.mxu0 %v188
      %v226 = vpop.f32.mrf.mxu0
      %v227 = vadd.f32 0.0, %v226
      %v228 = vpop.f32.mrf.mxu0
      %v229 = vadd.f32 0.0, %v228
      %230 = vdwg.mxu0
      %vm231 = vcmask 523264
      %v232 = vsel %vm231, %v212, -inf
      %233 = vmax.xlane.f32.xlu0 %v232
      %v234 = vpop.xlane.xlu0 %233
      %v235 = vsel %vm231, %v214, -inf
      %236 = vmax.xlane.f32.xlu0 %v235
      %v237 = vpop.xlane.xlu0 %236
      %v238 = vsel %vm231, %v217, -inf
      %239 = vmax.xlane.f32.xlu0 %v238
      %v240 = vpop.xlane.xlu0 %239
      %v241 = vsel %vm231, %v219, -inf
      %242 = vmax.xlane.f32.xlu0 %v241
      %v243 = vpop.xlane.xlu0 %242
      %v244 = vsel %vm231, %v222, -inf
      %245 = vmax.xlane.f32.xlu0 %v244
      %v246 = vpop.xlane.xlu0 %245
      %v247 = vsel %vm231, %v224, -inf
      %248 = vmax.xlane.f32.xlu0 %v247
      %v249 = vpop.xlane.xlu0 %248
      %v250 = vsel %vm231, %v227, -inf
      %251 = vmax.xlane.f32.xlu0 %v250
      %v252 = vpop.xlane.xlu0 %251
      %v253 = vsel %vm231, %v229, -inf
      %254 = vmax.xlane.f32.xlu0 %v253
      %v255 = vpop.xlane.xlu0 %254
      %v256 = vsub.f32 %v212, %v234
      %v257 = vsub.f32 %v214, %v237
      %v258 = vsub.f32 %v217, %v240
      %v259 = vsub.f32 %v219, %v243
      %v260 = vsub.f32 %v222, %v246
      %v261 = vsub.f32 %v224, %v249
      %v262 = vsub.f32 %v227, %v252
      %v263 = vsub.f32 %v229, %v255
      %v264 = vmul.f32 %v256, 1.442695
      %v265 = vpow.pop %v264
      %v266 = vmul.f32 %v257, 1.442695
      %v267 = vpow.pop %v266
      %v268 = vmul.f32 %v258, 1.442695
      %v269 = vpow.pop %v268
      %v270 = vmul.f32 %v259, 1.442695
      %v271 = vpow.pop %v270
      %v272 = vmul.f32 %v260, 1.442695
      %v273 = vpow.pop %v272
      %v274 = vmul.f32 %v261, 1.442695
      %v275 = vpow.pop %v274
      %v276 = vmul.f32 %v262, 1.442695
      %v277 = vpow.pop %v276
      %v278 = vmul.f32 %v263, 1.442695
      %v279 = vpow.pop %v278
      %v280 = vsel %vm231, %v265, 0.0
      %281 = vadd.xlane.f32.xlu0 %v280
      %v282 = vpop.xlane.xlu0 %281
      %v283 = vsel %vm231, %v267, 0.0
      %284 = vadd.xlane.f32.xlu0 %v283
      %v285 = vpop.xlane.xlu0 %284
      %v286 = vsel %vm231, %v269, 0.0
      %287 = vadd.xlane.f32.xlu0 %v286
      %v288 = vpop.xlane.xlu0 %287
      %v289 = vsel %vm231, %v271, 0.0
      %290 = vadd.xlane.f32.xlu0 %v289
      %v291 = vpop.xlane.xlu0 %290
      %v292 = vsel %vm231, %v273, 0.0
      %293 = vadd.xlane.f32.xlu0 %v292
      %v294 = vpop.xlane.xlu0 %293
      %v295 = vsel %vm231, %v275, 0.0
      %296 = vadd.xlane.f32.xlu0 %v295
      %v297 = vpop.xlane.xlu0 %296
      %v298 = vsel %vm231, %v277, 0.0
      %299 = vadd.xlane.f32.xlu0 %v298
      %v300 = vpop.xlane.xlu0 %299
      %v301 = vsel %vm231, %v279, 0.0
      %302 = vadd.xlane.f32.xlu0 %v301
      %v303 = vpop.xlane.xlu0 %302
      %v304 = vrcp.pop %v282
      %v305 = vrcp.pop %v285
      %v306 = vrcp.pop %v288
      %v307 = vrcp.pop %v291
      %v308 = vrcp.pop %v294
      %v309 = vrcp.pop %v297
      %v310 = vrcp.pop %v300
      %v311 = vrcp.pop %v303
      %v312 = vmul.f32 %v265, %v304
      %v313 = vmul.f32 %v267, %v305
      %v314 = vmul.f32 %v269, %v306
      %v315 = vmul.f32 %v271, %v307
      %v316 = vmul.f32 %v273, %v308
      %v317 = vmul.f32 %v275, %v309
      %v318 = vmul.f32 %v277, %v310
      %v319 = vmul.f32 %v279, %v311
      %v320 = vpack.c.bf16 %v313, %v312
      %v321 = vpack.c.bf16 %v315, %v314
      %v322 = vpack.c.bf16 %v317, %v316
      %v323 = vpack.c.bf16 %v319, %v318
      %324 = vrot.lane.b32.xlu0 %v165, 64
      %v325 = vpop.permute.xlu0 %324
      %326 = vrot.lane.b32.xlu0 %v166, 64
      %v327 = vpop.permute.xlu0 %326
      %328 = vrot.lane.b32.xlu0 %v167, 64
      %v329 = vpop.permute.xlu0 %328
      %330 = vrot.lane.b32.xlu0 %v168, 64
      %v331 = vpop.permute.xlu0 %330
      %v337 = vsel %vm231, %v320, 0
      %v340 = vsel %vm231, %v321, 0
      %v343 = vsel %vm231, %v322, 0
      %v346 = vsel %vm231, %v323, 0
      %348 = vmatpush.bf16.msra.mxu0 0
      %349 = vmatpush.bf16.msra.mxu0 0
      %350 = vmatpush.bf16.msra.mxu0 0
      %351 = vmatpush.bf16.msra.mxu0 0
      %352 = vmatpush.bf16.msra.mxu0 %v331
      %353 = vmatpush.bf16.msra.mxu0 %v329
      %354 = vmatpush.bf16.msra.mxu0 %v327
      %355 = vmatpush.bf16.msra.mxu0 %v325
      %356 = vmatmul.bf16.gmra.mxu0 %v337
      %v357 = vpop.f32.mrf.mxu0
      %v358 = vadd.f32 0.0, %v357
      %v359 = vpop.f32.mrf.mxu0
      %v360 = vadd.f32 0.0, %v359
      %361 = vmatmul.bf16.gmra.mxu0 %v340
      %v362 = vpop.f32.mrf.mxu0
      %v363 = vadd.f32 0.0, %v362
      %v364 = vpop.f32.mrf.mxu0
      %v365 = vadd.f32 0.0, %v364
      %366 = vmatmul.bf16.gmra.mxu0 %v343
      %v367 = vpop.f32.mrf.mxu0
      %v368 = vadd.f32 0.0, %v367
      %v369 = vpop.f32.mrf.mxu0
      %v370 = vadd.f32 0.0, %v369
      %371 = vmatmul.bf16.gmra.mxu0 %v346
      %v372 = vpop.f32.mrf.mxu0
      %v373 = vadd.f32 0.0, %v372
      %v374 = vpop.f32.mrf.mxu0
      %v375 = vadd.f32 0.0, %v374
      %376 = vdwg.mxu0
      %v377 = vpack.c.bf16 %v358, %v358
      %v378 = vpack.c.bf16 %v360, %v360
      %v379 = vpack.c.bf16 %v363, %v363
      %v380 = vpack.c.bf16 %v365, %v365
      %v381 = vpack.c.bf16 %v368, %v368
      %v382 = vpack.c.bf16 %v370, %v370
      %v383 = vpack.c.bf16 %v373, %v373
      %v384 = vpack.c.bf16 %v375, %v375
      %vm385 = vcmask 60416
      %386 = vst.msk [vmem:[%s118] sm:$0xf] %vm385, %v377
      %387 = vst.msk [vmem:[%s118 + $0x4] sm:$0xf] %vm385, %v378
      %388 = vst.msk [vmem:[%s118 + $0x8] sm:$0xf] %vm385, %v379
      %389 = vst.msk [vmem:[%s118 + $0xc] sm:$0xf] %vm385, %v380
      %390 = vst.msk [vmem:[%s118 + $0x10] sm:$0xf] %vm385, %v381
      %391 = vst.msk [vmem:[%s118 + $0x14] sm:$0xf] %vm385, %v382
      %392 = vst.msk [vmem:[%s118 + $0x18] sm:$0xf] %vm385, %v383
      %393 = vst.msk [vmem:[%s118 + $0x1c] sm:$0xf] %vm385, %v384
      %v394 = vld [vmem:[%s112] sm:$0xf]
      %v395 = vld [vmem:[%s112 + $0x4] sm:$0xf]
      %v396 = vld [vmem:[%s112 + $0x8] sm:$0xf]
      %v397 = vld [vmem:[%s112 + $0xc] sm:$0xf]
      %v398 = vld [vmem:[%s112 + $0x10] sm:$0xf]
      %v399 = vld [vmem:[%s112 + $0x14] sm:$0xf]
      %v400 = vld [vmem:[%s112 + $0x18] sm:$0xf]
      %v401 = vld [vmem:[%s112 + $0x1c] sm:$0xf]
      %v402 = vunpack.c.l.bf16 %v394
      %v403 = vunpack.c.l.bf16 %v395
      %v404 = vunpack.c.l.bf16 %v396
      %v405 = vunpack.c.l.bf16 %v397
      %v406 = vunpack.c.l.bf16 %v398
      %v407 = vunpack.c.l.bf16 %v399
      %v408 = vunpack.c.l.bf16 %v400
      %v409 = vunpack.c.l.bf16 %v401
      %v410 = vmul.f32 %v402, 0.35351563
      %v411 = vmul.f32 %v403, 0.35351563
      %v412 = vmul.f32 %v404, 0.35351563
      %v413 = vmul.f32 %v405, 0.35351563
      %v414 = vmul.f32 %v406, 0.35351563
      %v415 = vmul.f32 %v407, 0.35351563
      %v416 = vmul.f32 %v408, 0.35351563
      %v417 = vmul.f32 %v409, 0.35351563
      %v418 = vpack.c.bf16 %v411, %v410
      %v419 = vpack.c.bf16 %v413, %v412
      %v420 = vpack.c.bf16 %v415, %v414
      %v421 = vpack.c.bf16 %v417, %v416
      %426 = vrot.lane.b32.xlu0 %v418, 120
      %v427 = vpop.permute.xlu0 %426
      %428 = vrot.lane.b32.xlu0 %v419, 120
      %v429 = vpop.permute.xlu0 %428
      %430 = vrot.lane.b32.xlu0 %v420, 120
      %v431 = vpop.permute.xlu0 %430
      %432 = vrot.lane.b32.xlu0 %v421, 120
      %v433 = vpop.permute.xlu0 %432
      %v442 = vunpack.c.l.b16 %v394
      %v443 = vunpack.c.l.b16 %v395
      %v444 = vunpack.c.l.b16 %v396
      %v445 = vunpack.c.l.b16 %v397
      %v446 = vunpack.c.l.b16 %v398
      %v447 = vunpack.c.l.b16 %v399
      %v448 = vunpack.c.l.b16 %v400
      %v449 = vunpack.c.l.b16 %v401
      %v450 = vpack.c.b16 %v443, %v442
      %v451 = vpack.c.b16 %v445, %v444
      %v452 = vpack.c.b16 %v447, %v446
      %v453 = vpack.c.b16 %v449, %v448
      %454 = vrot.lane.b32.xlu0 %v450, 88
      %v455 = vpop.permute.xlu0 %454
      %456 = vrot.lane.b32.xlu0 %v451, 88
      %v457 = vpop.permute.xlu0 %456
      %458 = vrot.lane.b32.xlu0 %v452, 88
      %v459 = vpop.permute.xlu0 %458
      %460 = vrot.lane.b32.xlu0 %v453, 88
      %v461 = vpop.permute.xlu0 %460
      %v463 = vsel %vm177, %v427, 0
      %v466 = vsel %vm177, %v429, 0
      %v469 = vsel %vm177, %v431, 0
      %v472 = vsel %vm177, %v433, 0
      %v475 = vsel %vm177, %v455, 0
      %v478 = vsel %vm177, %v457, 0
      %v481 = vsel %vm177, %v459, 0
      %v484 = vsel %vm177, %v461, 0
      %486 = vmatpush.bf16.xpose.msra.mxu0 0
      %487 = vmatpush.bf16.xpose.msra.mxu0 0
      %488 = vmatpush.bf16.xpose.msra.mxu0 0
      %489 = vmatpush.bf16.xpose.msra.mxu0 0
      %490 = vmatpush.bf16.xpose.msra.mxu0 %v484
      %491 = vmatpush.bf16.xpose.msra.mxu0 %v481
      %492 = vmatpush.bf16.xpose.msra.mxu0 %v478
      %493 = vmatpush.bf16.xpose.msra.mxu0 %v475
      %494 = vmatmul.bf16.gmra.mxu0 %v463
      %v495 = vpop.f32.mrf.mxu0
      %v496 = vadd.f32 0.0, %v495
      %v497 = vpop.f32.mrf.mxu0
      %v498 = vadd.f32 0.0, %v497
      %499 = vmatmul.bf16.gmra.mxu0 %v466
      %v500 = vpop.f32.mrf.mxu0
      %v501 = vadd.f32 0.0, %v500
      %v502 = vpop.f32.mrf.mxu0
      %v503 = vadd.f32 0.0, %v502
      %504 = vmatmul.bf16.gmra.mxu0 %v469
      %v505 = vpop.f32.mrf.mxu0
      %v506 = vadd.f32 0.0, %v505
      %v507 = vpop.f32.mrf.mxu0
      %v508 = vadd.f32 0.0, %v507
      %509 = vmatmul.bf16.gmra.mxu0 %v472
      %v510 = vpop.f32.mrf.mxu0
      %v511 = vadd.f32 0.0, %v510
      %v512 = vpop.f32.mrf.mxu0
      %v513 = vadd.f32 0.0, %v512
      %514 = vdwg.mxu0
      %v515 = vsel %vm231, %v496, -inf
      %516 = vmax.xlane.f32.xlu0 %v515
      %v517 = vpop.xlane.xlu0 %516
      %v518 = vsel %vm231, %v498, -inf
      %519 = vmax.xlane.f32.xlu0 %v518
      %v520 = vpop.xlane.xlu0 %519
      %v521 = vsel %vm231, %v501, -inf
      %522 = vmax.xlane.f32.xlu0 %v521
      %v523 = vpop.xlane.xlu0 %522
      %v524 = vsel %vm231, %v503, -inf
      %525 = vmax.xlane.f32.xlu0 %v524
      %v526 = vpop.xlane.xlu0 %525
      %v527 = vsel %vm231, %v506, -inf
      %528 = vmax.xlane.f32.xlu0 %v527
      %v529 = vpop.xlane.xlu0 %528
      %v530 = vsel %vm231, %v508, -inf
      %531 = vmax.xlane.f32.xlu0 %v530
      %v532 = vpop.xlane.xlu0 %531
      %v533 = vsel %vm231, %v511, -inf
      %534 = vmax.xlane.f32.xlu0 %v533
      %v535 = vpop.xlane.xlu0 %534
      %v536 = vsel %vm231, %v513, -inf
      %537 = vmax.xlane.f32.xlu0 %v536
      %v538 = vpop.xlane.xlu0 %537
      %v539 = vsub.f32 %v496, %v517
      %v540 = vsub.f32 %v498, %v520
      %v541 = vsub.f32 %v501, %v523
      %v542 = vsub.f32 %v503, %v526
      %v543 = vsub.f32 %v506, %v529
      %v544 = vsub.f32 %v508, %v532
      %v545 = vsub.f32 %v511, %v535
      %v546 = vsub.f32 %v513, %v538
      %v547 = vmul.f32 %v539, 1.442695
      %v548 = vpow.pop %v547
      %v549 = vmul.f32 %v540, 1.442695
      %v550 = vpow.pop %v549
      %v551 = vmul.f32 %v541, 1.442695
      %v552 = vpow.pop %v551
      %v553 = vmul.f32 %v542, 1.442695
      %v554 = vpow.pop %v553
      %v555 = vmul.f32 %v543, 1.442695
      %v556 = vpow.pop %v555
      %v557 = vmul.f32 %v544, 1.442695
      %v558 = vpow.pop %v557
      %v559 = vmul.f32 %v545, 1.442695
      %v560 = vpow.pop %v559
      %v561 = vmul.f32 %v546, 1.442695
      %v562 = vpow.pop %v561
      %v563 = vsel %vm231, %v548, 0.0
      %564 = vadd.xlane.f32.xlu0 %v563
      %v565 = vpop.xlane.xlu0 %564
      %v566 = vsel %vm231, %v550, 0.0
      %567 = vadd.xlane.f32.xlu0 %v566
      %v568 = vpop.xlane.xlu0 %567
      %v569 = vsel %vm231, %v552, 0.0
      %570 = vadd.xlane.f32.xlu0 %v569
      %v571 = vpop.xlane.xlu0 %570
      %v572 = vsel %vm231, %v554, 0.0
      %573 = vadd.xlane.f32.xlu0 %v572
      %v574 = vpop.xlane.xlu0 %573
      %v575 = vsel %vm231, %v556, 0.0
      %576 = vadd.xlane.f32.xlu0 %v575
      %v577 = vpop.xlane.xlu0 %576
      %v578 = vsel %vm231, %v558, 0.0
      %579 = vadd.xlane.f32.xlu0 %v578
      %v580 = vpop.xlane.xlu0 %579
      %v581 = vsel %vm231, %v560, 0.0
      %582 = vadd.xlane.f32.xlu0 %v581
      %v583 = vpop.xlane.xlu0 %582
      %v584 = vsel %vm231, %v562, 0.0
      %585 = vadd.xlane.f32.xlu0 %v584
      %v586 = vpop.xlane.xlu0 %585
      %v587 = vrcp.pop %v565
      %v588 = vrcp.pop %v568
      %v589 = vrcp.pop %v571
      %v590 = vrcp.pop %v574
      %v591 = vrcp.pop %v577
      %v592 = vrcp.pop %v580
      %v593 = vrcp.pop %v583
      %v594 = vrcp.pop %v586
      %v595 = vmul.f32 %v548, %v587
      %v596 = vmul.f32 %v550, %v588
      %v597 = vmul.f32 %v552, %v589
      %v598 = vmul.f32 %v554, %v590
      %v599 = vmul.f32 %v556, %v591
      %v600 = vmul.f32 %v558, %v592
      %v601 = vmul.f32 %v560, %v593
      %v602 = vmul.f32 %v562, %v594
      %v603 = vpack.c.bf16 %v596, %v595
      %v604 = vpack.c.bf16 %v598, %v597
      %v605 = vpack.c.bf16 %v600, %v599
      %v606 = vpack.c.bf16 %v602, %v601
      %607 = vrot.lane.b32.xlu0 %v450, 56
      %v608 = vpop.permute.xlu0 %607
      %609 = vrot.lane.b32.xlu0 %v451, 56
      %v610 = vpop.permute.xlu0 %609
      %611 = vrot.lane.b32.xlu0 %v452, 56
      %v612 = vpop.permute.xlu0 %611
      %613 = vrot.lane.b32.xlu0 %v453, 56
      %v614 = vpop.permute.xlu0 %613
      %v620 = vsel %vm231, %v603, 0
      %v623 = vsel %vm231, %v604, 0
      %v626 = vsel %vm231, %v605, 0
      %v629 = vsel %vm231, %v606, 0
      %631 = vmatpush.bf16.msra.mxu0 0
      %632 = vmatpush.bf16.msra.mxu0 0
      %633 = vmatpush.bf16.msra.mxu0 0
      %634 = vmatpush.bf16.msra.mxu0 0
      %635 = vmatpush.bf16.msra.mxu0 %v614
      %636 = vmatpush.bf16.msra.mxu0 %v612
      %637 = vmatpush.bf16.msra.mxu0 %v610
      %638 = vmatpush.bf16.msra.mxu0 %v608
      %639 = vmatmul.bf16.gmra.mxu0 %v620
      %v640 = vpop.f32.mrf.mxu0
      %v641 = vadd.f32 0.0, %v640
      %v642 = vpop.f32.mrf.mxu0
      %v643 = vadd.f32 0.0, %v642
      %644 = vmatmul.bf16.gmra.mxu0 %v623
      %v645 = vpop.f32.mrf.mxu0
      %v646 = vadd.f32 0.0, %v645
      %v647 = vpop.f32.mrf.mxu0
      %v648 = vadd.f32 0.0, %v647
      %649 = vmatmul.bf16.gmra.mxu0 %v626
      %v650 = vpop.f32.mrf.mxu0
      %v651 = vadd.f32 0.0, %v650
      %v652 = vpop.f32.mrf.mxu0
      %v653 = vadd.f32 0.0, %v652
      %654 = vmatmul.bf16.gmra.mxu0 %v629
      %v655 = vpop.f32.mrf.mxu0
      %v656 = vadd.f32 0.0, %v655
      %v657 = vpop.f32.mrf.mxu0
      %v658 = vadd.f32 0.0, %v657
      %659 = vdwg.mxu0
      %v660 = vpack.c.bf16 %v641, %v641
      %v661 = vpack.c.bf16 %v643, %v643
      %v662 = vpack.c.bf16 %v646, %v646
      %v663 = vpack.c.bf16 %v648, %v648
      %v664 = vpack.c.bf16 %v651, %v651
      %v665 = vpack.c.bf16 %v653, %v653
      %v666 = vpack.c.bf16 %v656, %v656
      %v667 = vpack.c.bf16 %v658, %v658
      %676 = vrot.lane.b32.xlu0 %v660, 8
      %v677 = vpop.permute.xlu0 %676
      %678 = vrot.lane.b32.xlu0 %v661, 8
      %v679 = vpop.permute.xlu0 %678
      %680 = vrot.lane.b32.xlu0 %v662, 8
      %v681 = vpop.permute.xlu0 %680
      %682 = vrot.lane.b32.xlu0 %v663, 8
      %v683 = vpop.permute.xlu0 %682
      %684 = vrot.lane.b32.xlu0 %v664, 8
      %v685 = vpop.permute.xlu0 %684
      %686 = vrot.lane.b32.xlu0 %v665, 8
      %v687 = vpop.permute.xlu0 %686
      %688 = vrot.lane.b32.xlu0 %v666, 8
      %v689 = vpop.permute.xlu0 %688
      %690 = vrot.lane.b32.xlu0 %v667, 8
      %v691 = vpop.permute.xlu0 %690
      %vm700 = vcmask 126016
      %701 = vst.msk [vmem:[%s118] sm:$0xf] %vm700, %v677
      %702 = vst.msk [vmem:[%s118 + $0x4] sm:$0xf] %vm700, %v679
      %703 = vst.msk [vmem:[%s118 + $0x8] sm:$0xf] %vm700, %v681
      %704 = vst.msk [vmem:[%s118 + $0xc] sm:$0xf] %vm700, %v683
      %705 = vst.msk [vmem:[%s118 + $0x10] sm:$0xf] %vm700, %v685
      %706 = vst.msk [vmem:[%s118 + $0x14] sm:$0xf] %vm700, %v687
      %707 = vst.msk [vmem:[%s118 + $0x18] sm:$0xf] %vm700, %v689
      %708 = vst.msk [vmem:[%s118 + $0x1c] sm:$0xf] %vm700, %v691
      %v709 = vld [vmem:[%s112] sm:$0xf]
      %v710 = vld [vmem:[%s112 + $0x4] sm:$0xf]
      %v711 = vld [vmem:[%s112 + $0x8] sm:$0xf]
      %v712 = vld [vmem:[%s112 + $0xc] sm:$0xf]
      %v713 = vld [vmem:[%s112 + $0x10] sm:$0xf]
      %v714 = vld [vmem:[%s112 + $0x14] sm:$0xf]
      %v715 = vld [vmem:[%s112 + $0x18] sm:$0xf]
      %v716 = vld [vmem:[%s112 + $0x1c] sm:$0xf]
      %v717 = vunpack.c.l.bf16 %v709
      %v718 = vunpack.c.l.bf16 %v710
      %v719 = vunpack.c.l.bf16 %v711
      %v720 = vunpack.c.l.bf16 %v712
      %v721 = vunpack.c.l.bf16 %v713
      %v722 = vunpack.c.l.bf16 %v714
      %v723 = vunpack.c.l.bf16 %v715
      %v724 = vunpack.c.l.bf16 %v716
      %v725 = vmul.f32 %v717, 0.35351563
      %v726 = vmul.f32 %v718, 0.35351563
      %v727 = vmul.f32 %v719, 0.35351563
      %v728 = vmul.f32 %v720, 0.35351563
      %v729 = vmul.f32 %v721, 0.35351563
      %v730 = vmul.f32 %v722, 0.35351563
      %v731 = vmul.f32 %v723, 0.35351563
      %v732 = vmul.f32 %v724, 0.35351563
      %v733 = vpack.c.bf16 %v726, %v725
      %v734 = vpack.c.bf16 %v728, %v727
      %v735 = vpack.c.bf16 %v730, %v729
      %v736 = vpack.c.bf16 %v732, %v731
      %741 = vrot.lane.b32.xlu0 %v733, 112
      %v742 = vpop.permute.xlu0 %741
      %743 = vrot.lane.b32.xlu0 %v734, 112
      %v744 = vpop.permute.xlu0 %743
      %745 = vrot.lane.b32.xlu0 %v735, 112
      %v746 = vpop.permute.xlu0 %745
      %747 = vrot.lane.b32.xlu0 %v736, 112
      %v748 = vpop.permute.xlu0 %747
      %v757 = vunpack.c.l.b16 %v709
      %v758 = vunpack.c.l.b16 %v710
      %v759 = vunpack.c.l.b16 %v711
      %v760 = vunpack.c.l.b16 %v712
      %v761 = vunpack.c.l.b16 %v713
      %v762 = vunpack.c.l.b16 %v714
      %v763 = vunpack.c.l.b16 %v715
      %v764 = vunpack.c.l.b16 %v716
      %v765 = vpack.c.b16 %v758, %v757
      %v766 = vpack.c.b16 %v760, %v759
      %v767 = vpack.c.b16 %v762, %v761
      %v768 = vpack.c.b16 %v764, %v763
      %769 = vrot.lane.b32.xlu0 %v765, 80
      %v770 = vpop.permute.xlu0 %769
      %771 = vrot.lane.b32.xlu0 %v766, 80
      %v772 = vpop.permute.xlu0 %771
      %773 = vrot.lane.b32.xlu0 %v767, 80
      %v774 = vpop.permute.xlu0 %773
      %775 = vrot.lane.b32.xlu0 %v768, 80
      %v776 = vpop.permute.xlu0 %775
      %v778 = vsel %vm177, %v742, 0
      %v781 = vsel %vm177, %v744, 0
      %v784 = vsel %vm177, %v746, 0
      %v787 = vsel %vm177, %v748, 0
      %v790 = vsel %vm177, %v770, 0
      %v793 = vsel %vm177, %v772, 0
      %v796 = vsel %vm177, %v774, 0
      %v799 = vsel %vm177, %v776, 0
      %801 = vmatpush.bf16.xpose.msra.mxu0 0
      %802 = vmatpush.bf16.xpose.msra.mxu0 0
      %803 = vmatpush.bf16.xpose.msra.mxu0 0
      %804 = vmatpush.bf16.xpose.msra.mxu0 0
      %805 = vmatpush.bf16.xpose.msra.mxu0 %v799
      %806 = vmatpush.bf16.xpose.msra.mxu0 %v796
      %807 = vmatpush.bf16.xpose.msra.mxu0 %v793
      %808 = vmatpush.bf16.xpose.msra.mxu0 %v790
      %809 = vmatmul.bf16.gmra.mxu0 %v778
      %v810 = vpop.f32.mrf.mxu0
      %v811 = vadd.f32 0.0, %v810
      %v812 = vpop.f32.mrf.mxu0
      %v813 = vadd.f32 0.0, %v812
      %814 = vmatmul.bf16.gmra.mxu0 %v781
      %v815 = vpop.f32.mrf.mxu0
      %v816 = vadd.f32 0.0, %v815
      %v817 = vpop.f32.mrf.mxu0
      %v818 = vadd.f32 0.0, %v817
      %819 = vmatmul.bf16.gmra.mxu0 %v784
      %v820 = vpop.f32.mrf.mxu0
      %v821 = vadd.f32 0.0, %v820
      %v822 = vpop.f32.mrf.mxu0
      %v823 = vadd.f32 0.0, %v822
      %824 = vmatmul.bf16.gmra.mxu0 %v787
      %v825 = vpop.f32.mrf.mxu0
      %v826 = vadd.f32 0.0, %v825
      %v827 = vpop.f32.mrf.mxu0
      %v828 = vadd.f32 0.0, %v827
      %829 = vdwg.mxu0
      %v830 = vsel %vm231, %v811, -inf
      %831 = vmax.xlane.f32.xlu0 %v830
      %v832 = vpop.xlane.xlu0 %831
      %v833 = vsel %vm231, %v813, -inf
      %834 = vmax.xlane.f32.xlu0 %v833
      %v835 = vpop.xlane.xlu0 %834
      %v836 = vsel %vm231, %v816, -inf
      %837 = vmax.xlane.f32.xlu0 %v836
      %v838 = vpop.xlane.xlu0 %837
      %v839 = vsel %vm231, %v818, -inf
      %840 = vmax.xlane.f32.xlu0 %v839
      %v841 = vpop.xlane.xlu0 %840
      %v842 = vsel %vm231, %v821, -inf
      %843 = vmax.xlane.f32.xlu0 %v842
      %v844 = vpop.xlane.xlu0 %843
      %v845 = vsel %vm231, %v823, -inf
      %846 = vmax.xlane.f32.xlu0 %v845
      %v847 = vpop.xlane.xlu0 %846
      %v848 = vsel %vm231, %v826, -inf
      %849 = vmax.xlane.f32.xlu0 %v848
      %v850 = vpop.xlane.xlu0 %849
      %v851 = vsel %vm231, %v828, -inf
      %852 = vmax.xlane.f32.xlu0 %v851
      %v853 = vpop.xlane.xlu0 %852
      %v854 = vsub.f32 %v811, %v832
      %v855 = vsub.f32 %v813, %v835
      %v856 = vsub.f32 %v816, %v838
      %v857 = vsub.f32 %v818, %v841
      %v858 = vsub.f32 %v821, %v844
      %v859 = vsub.f32 %v823, %v847
      %v860 = vsub.f32 %v826, %v850
      %v861 = vsub.f32 %v828, %v853
      %v862 = vmul.f32 %v854, 1.442695
      %v863 = vpow.pop %v862
      %v864 = vmul.f32 %v855, 1.442695
      %v865 = vpow.pop %v864
      %v866 = vmul.f32 %v856, 1.442695
      %v867 = vpow.pop %v866
      %v868 = vmul.f32 %v857, 1.442695
      %v869 = vpow.pop %v868
      %v870 = vmul.f32 %v858, 1.442695
      %v871 = vpow.pop %v870
      %v872 = vmul.f32 %v859, 1.442695
      %v873 = vpow.pop %v872
      %v874 = vmul.f32 %v860, 1.442695
      %v875 = vpow.pop %v874
      %v876 = vmul.f32 %v861, 1.442695
      %v877 = vpow.pop %v876
      %v878 = vsel %vm231, %v863, 0.0
      %879 = vadd.xlane.f32.xlu0 %v878
      %v880 = vpop.xlane.xlu0 %879
      %v881 = vsel %vm231, %v865, 0.0
      %882 = vadd.xlane.f32.xlu0 %v881
      %v883 = vpop.xlane.xlu0 %882
      %v884 = vsel %vm231, %v867, 0.0
      %885 = vadd.xlane.f32.xlu0 %v884
      %v886 = vpop.xlane.xlu0 %885
      %v887 = vsel %vm231, %v869, 0.0
      %888 = vadd.xlane.f32.xlu0 %v887
      %v889 = vpop.xlane.xlu0 %888
      %v890 = vsel %vm231, %v871, 0.0
      %891 = vadd.xlane.f32.xlu0 %v890
      %v892 = vpop.xlane.xlu0 %891
      %v893 = vsel %vm231, %v873, 0.0
      %894 = vadd.xlane.f32.xlu0 %v893
      %v895 = vpop.xlane.xlu0 %894
      %v896 = vsel %vm231, %v875, 0.0
      %897 = vadd.xlane.f32.xlu0 %v896
      %v898 = vpop.xlane.xlu0 %897
      %v899 = vsel %vm231, %v877, 0.0
      %900 = vadd.xlane.f32.xlu0 %v899
      %v901 = vpop.xlane.xlu0 %900
      %v902 = vrcp.pop %v880
      %v903 = vrcp.pop %v883
      %v904 = vrcp.pop %v886
      %v905 = vrcp.pop %v889
      %v906 = vrcp.pop %v892
      %v907 = vrcp.pop %v895
      %v908 = vrcp.pop %v898
      %v909 = vrcp.pop %v901
      %v910 = vmul.f32 %v863, %v902
      %v911 = vmul.f32 %v865, %v903
      %v912 = vmul.f32 %v867, %v904
      %v913 = vmul.f32 %v869, %v905
      %v914 = vmul.f32 %v871, %v906
      %v915 = vmul.f32 %v873, %v907
      %v916 = vmul.f32 %v875, %v908
      %v917 = vmul.f32 %v877, %v909
      %v918 = vpack.c.bf16 %v911, %v910
      %v919 = vpack.c.bf16 %v913, %v912
      %v920 = vpack.c.bf16 %v915, %v914
      %v921 = vpack.c.bf16 %v917, %v916
      %922 = vrot.lane.b32.xlu0 %v765, 48
      %v923 = vpop.permute.xlu0 %922
      %924 = vrot.lane.b32.xlu0 %v766, 48
      %v925 = vpop.permute.xlu0 %924
      %926 = vrot.lane.b32.xlu0 %v767, 48
      %v927 = vpop.permute.xlu0 %926
      %928 = vrot.lane.b32.xlu0 %v768, 48
      %v929 = vpop.permute.xlu0 %928
      %v935 = vsel %vm231, %v918, 0
      %v938 = vsel %vm231, %v919, 0
      %v941 = vsel %vm231, %v920, 0
      %v944 = vsel %vm231, %v921, 0
      %946 = vmatpush.bf16.msra.mxu0 0
      %947 = vmatpush.bf16.msra.mxu0 0
      %948 = vmatpush.bf16.msra.mxu0 0
      %949 = vmatpush.bf16.msra.mxu0 0
      %950 = vmatpush.bf16.msra.mxu0 %v929
      %951 = vmatpush.bf16.msra.mxu0 %v927
      %952 = vmatpush.bf16.msra.mxu0 %v925
      %953 = vmatpush.bf16.msra.mxu0 %v923
      %954 = vmatmul.bf16.gmra.mxu0 %v935
      %v955 = vpop.f32.mrf.mxu0
      %v956 = vadd.f32 0.0, %v955
      %v957 = vpop.f32.mrf.mxu0
      %v958 = vadd.f32 0.0, %v957
      %959 = vmatmul.bf16.gmra.mxu0 %v938
      %v960 = vpop.f32.mrf.mxu0
      %v961 = vadd.f32 0.0, %v960
      %v962 = vpop.f32.mrf.mxu0
      %v963 = vadd.f32 0.0, %v962
      %964 = vmatmul.bf16.gmra.mxu0 %v941
      %v965 = vpop.f32.mrf.mxu0
      %v966 = vadd.f32 0.0, %v965
      %v967 = vpop.f32.mrf.mxu0
      %v968 = vadd.f32 0.0, %v967
      %969 = vmatmul.bf16.gmra.mxu0 %v944
      %v970 = vpop.f32.mrf.mxu0
      %v971 = vadd.f32 0.0, %v970
      %v972 = vpop.f32.mrf.mxu0
      %v973 = vadd.f32 0.0, %v972
      %974 = vdwg.mxu0
      %v975 = vpack.c.bf16 %v956, %v956
      %v976 = vpack.c.bf16 %v958, %v958
      %v977 = vpack.c.bf16 %v961, %v961
      %v978 = vpack.c.bf16 %v963, %v963
      %v979 = vpack.c.bf16 %v966, %v966
      %v980 = vpack.c.bf16 %v968, %v968
      %v981 = vpack.c.bf16 %v971, %v971
      %v982 = vpack.c.bf16 %v973, %v973
      %991 = vrot.lane.b32.xlu0 %v975, 16
      %v992 = vpop.permute.xlu0 %991
      %993 = vrot.lane.b32.xlu0 %v976, 16
      %v994 = vpop.permute.xlu0 %993
      %995 = vrot.lane.b32.xlu0 %v977, 16
      %v996 = vpop.permute.xlu0 %995
      %997 = vrot.lane.b32.xlu0 %v978, 16
      %v998 = vpop.permute.xlu0 %997
      %999 = vrot.lane.b32.xlu0 %v979, 16
      %v1000 = vpop.permute.xlu0 %999
      %1001 = vrot.lane.b32.xlu0 %v980, 16
      %v1002 = vpop.permute.xlu0 %1001
      %1003 = vrot.lane.b32.xlu0 %v981, 16
      %v1004 = vpop.permute.xlu0 %1003
      %1005 = vrot.lane.b32.xlu0 %v982, 16
      %v1006 = vpop.permute.xlu0 %1005
      %vm1015 = vcmask 191616
      %1016 = vst.msk [vmem:[%s118] sm:$0xf] %vm1015, %v992
      %1017 = vst.msk [vmem:[%s118 + $0x4] sm:$0xf] %vm1015, %v994
      %1018 = vst.msk [vmem:[%s118 + $0x8] sm:$0xf] %vm1015, %v996
      %1019 = vst.msk [vmem:[%s118 + $0xc] sm:$0xf] %vm1015, %v998
      %1020 = vst.msk [vmem:[%s118 + $0x10] sm:$0xf] %vm1015, %v1000
      %1021 = vst.msk [vmem:[%s118 + $0x14] sm:$0xf] %vm1015, %v1002
      %1022 = vst.msk [vmem:[%s118 + $0x18] sm:$0xf] %vm1015, %v1004
      %1023 = vst.msk [vmem:[%s118 + $0x1c] sm:$0xf] %vm1015, %v1006
      %v1024 = vld [vmem:[%s112] sm:$0xf]
      %v1025 = vld [vmem:[%s112 + $0x4] sm:$0xf]
      %v1026 = vld [vmem:[%s112 + $0x8] sm:$0xf]
      %v1027 = vld [vmem:[%s112 + $0xc] sm:$0xf]
      %v1028 = vld [vmem:[%s112 + $0x10] sm:$0xf]
      %v1029 = vld [vmem:[%s112 + $0x14] sm:$0xf]
      %v1030 = vld [vmem:[%s112 + $0x18] sm:$0xf]
      %v1031 = vld [vmem:[%s112 + $0x1c] sm:$0xf]
      %v1032 = vunpack.c.l.bf16 %v1024
      %v1033 = vunpack.c.l.bf16 %v1025
      %v1034 = vunpack.c.l.bf16 %v1026
      %v1035 = vunpack.c.l.bf16 %v1027
      %v1036 = vunpack.c.l.bf16 %v1028
      %v1037 = vunpack.c.l.bf16 %v1029
      %v1038 = vunpack.c.l.bf16 %v1030
      %v1039 = vunpack.c.l.bf16 %v1031
      %v1040 = vmul.f32 %v1032, 0.35351563
      %v1041 = vmul.f32 %v1033, 0.35351563
      %v1042 = vmul.f32 %v1034, 0.35351563
      %v1043 = vmul.f32 %v1035, 0.35351563
      %v1044 = vmul.f32 %v1036, 0.35351563
      %v1045 = vmul.f32 %v1037, 0.35351563
      %v1046 = vmul.f32 %v1038, 0.35351563
      %v1047 = vmul.f32 %v1039, 0.35351563
      %v1048 = vpack.c.bf16 %v1041, %v1040
      %v1049 = vpack.c.bf16 %v1043, %v1042
      %v1050 = vpack.c.bf16 %v1045, %v1044
      %v1051 = vpack.c.bf16 %v1047, %v1046
      %1056 = vrot.lane.b32.xlu0 %v1048, 104
      %v1057 = vpop.permute.xlu0 %1056
      %1058 = vrot.lane.b32.xlu0 %v1049, 104
      %v1059 = vpop.permute.xlu0 %1058
      %1060 = vrot.lane.b32.xlu0 %v1050, 104
      %v1061 = vpop.permute.xlu0 %1060
      %1062 = vrot.lane.b32.xlu0 %v1051, 104
      %v1063 = vpop.permute.xlu0 %1062
      %v1072 = vunpack.c.l.b16 %v1024
      %v1073 = vunpack.c.l.b16 %v1025
      %v1074 = vunpack.c.l.b16 %v1026
      %v1075 = vunpack.c.l.b16 %v1027
      %v1076 = vunpack.c.l.b16 %v1028
      %v1077 = vunpack.c.l.b16 %v1029
      %v1078 = vunpack.c.l.b16 %v1030
      %v1079 = vunpack.c.l.b16 %v1031
      %v1080 = vpack.c.b16 %v1073, %v1072
      %v1081 = vpack.c.b16 %v1075, %v1074
      %v1082 = vpack.c.b16 %v1077, %v1076
      %v1083 = vpack.c.b16 %v1079, %v1078
      %1084 = vrot.lane.b32.xlu0 %v1080, 72
      %v1085 = vpop.permute.xlu0 %1084
      %1086 = vrot.lane.b32.xlu0 %v1081, 72
      %v1087 = vpop.permute.xlu0 %1086
      %1088 = vrot.lane.b32.xlu0 %v1082, 72
      %v1089 = vpop.permute.xlu0 %1088
      %1090 = vrot.lane.b32.xlu0 %v1083, 72
      %v1091 = vpop.permute.xlu0 %1090
      %v1093 = vsel %vm177, %v1057, 0
      %v1096 = vsel %vm177, %v1059, 0
      %v1099 = vsel %vm177, %v1061, 0
      %v1102 = vsel %vm177, %v1063, 0
      %v1105 = vsel %vm177, %v1085, 0
      %v1108 = vsel %vm177, %v1087, 0
      %v1111 = vsel %vm177, %v1089, 0
      %v1114 = vsel %vm177, %v1091, 0
      %1116 = vmatpush.bf16.xpose.msra.mxu0 0
      %1117 = vmatpush.bf16.xpose.msra.mxu0 0
      %1118 = vmatpush.bf16.xpose.msra.mxu0 0
      %1119 = vmatpush.bf16.xpose.msra.mxu0 0
      %1120 = vmatpush.bf16.xpose.msra.mxu0 %v1114
      %1121 = vmatpush.bf16.xpose.msra.mxu0 %v1111
      %1122 = vmatpush.bf16.xpose.msra.mxu0 %v1108
      %1123 = vmatpush.bf16.xpose.msra.mxu0 %v1105
      %1124 = vmatmul.bf16.gmra.mxu0 %v1093
      %v1125 = vpop.f32.mrf.mxu0
      %v1126 = vadd.f32 0.0, %v1125
      %v1127 = vpop.f32.mrf.mxu0
      %v1128 = vadd.f32 0.0, %v1127
      %1129 = vmatmul.bf16.gmra.mxu0 %v1096
      %v1130 = vpop.f32.mrf.mxu0
      %v1131 = vadd.f32 0.0, %v1130
      %v1132 = vpop.f32.mrf.mxu0
      %v1133 = vadd.f32 0.0, %v1132
      %1134 = vmatmul.bf16.gmra.mxu0 %v1099
      %v1135 = vpop.f32.mrf.mxu0
      %v1136 = vadd.f32 0.0, %v1135
      %v1137 = vpop.f32.mrf.mxu0
      %v1138 = vadd.f32 0.0, %v1137
      %1139 = vmatmul.bf16.gmra.mxu0 %v1102
      %v1140 = vpop.f32.mrf.mxu0
      %v1141 = vadd.f32 0.0, %v1140
      %v1142 = vpop.f32.mrf.mxu0
      %v1143 = vadd.f32 0.0, %v1142
      %1144 = vdwg.mxu0
      %v1145 = vsel %vm231, %v1126, -inf
      %1146 = vmax.xlane.f32.xlu0 %v1145
      %v1147 = vpop.xlane.xlu0 %1146
      %v1148 = vsel %vm231, %v1128, -inf
      %1149 = vmax.xlane.f32.xlu0 %v1148
      %v1150 = vpop.xlane.xlu0 %1149
      %v1151 = vsel %vm231, %v1131, -inf
      %1152 = vmax.xlane.f32.xlu0 %v1151
      %v1153 = vpop.xlane.xlu0 %1152
      %v1154 = vsel %vm231, %v1133, -inf
      %1155 = vmax.xlane.f32.xlu0 %v1154
      %v1156 = vpop.xlane.xlu0 %1155
      %v1157 = vsel %vm231, %v1136, -inf
      %1158 = vmax.xlane.f32.xlu0 %v1157
      %v1159 = vpop.xlane.xlu0 %1158
      %v1160 = vsel %vm231, %v1138, -inf
      %1161 = vmax.xlane.f32.xlu0 %v1160
      %v1162 = vpop.xlane.xlu0 %1161
      %v1163 = vsel %vm231, %v1141, -inf
      %1164 = vmax.xlane.f32.xlu0 %v1163
      %v1165 = vpop.xlane.xlu0 %1164
      %v1166 = vsel %vm231, %v1143, -inf
      %1167 = vmax.xlane.f32.xlu0 %v1166
      %v1168 = vpop.xlane.xlu0 %1167
      %v1169 = vsub.f32 %v1126, %v1147
      %v1170 = vsub.f32 %v1128, %v1150
      %v1171 = vsub.f32 %v1131, %v1153
      %v1172 = vsub.f32 %v1133, %v1156
      %v1173 = vsub.f32 %v1136, %v1159
      %v1174 = vsub.f32 %v1138, %v1162
      %v1175 = vsub.f32 %v1141, %v1165
      %v1176 = vsub.f32 %v1143, %v1168
      %v1177 = vmul.f32 %v1169, 1.442695
      %v1178 = vpow.pop %v1177
      %v1179 = vmul.f32 %v1170, 1.442695
      %v1180 = vpow.pop %v1179
      %v1181 = vmul.f32 %v1171, 1.442695
      %v1182 = vpow.pop %v1181
      %v1183 = vmul.f32 %v1172, 1.442695
      %v1184 = vpow.pop %v1183
      %v1185 = vmul.f32 %v1173, 1.442695
      %v1186 = vpow.pop %v1185
      %v1187 = vmul.f32 %v1174, 1.442695
      %v1188 = vpow.pop %v1187
      %v1189 = vmul.f32 %v1175, 1.442695
      %v1190 = vpow.pop %v1189
      %v1191 = vmul.f32 %v1176, 1.442695
      %v1192 = vpow.pop %v1191
      %v1193 = vsel %vm231, %v1178, 0.0
      %1194 = vadd.xlane.f32.xlu0 %v1193
      %v1195 = vpop.xlane.xlu0 %1194
      %v1196 = vsel %vm231, %v1180, 0.0
      %1197 = vadd.xlane.f32.xlu0 %v1196
      %v1198 = vpop.xlane.xlu0 %1197
      %v1199 = vsel %vm231, %v1182, 0.0
      %1200 = vadd.xlane.f32.xlu0 %v1199
      %v1201 = vpop.xlane.xlu0 %1200
      %v1202 = vsel %vm231, %v1184, 0.0
      %1203 = vadd.xlane.f32.xlu0 %v1202
      %v1204 = vpop.xlane.xlu0 %1203
      %v1205 = vsel %vm231, %v1186, 0.0
      %1206 = vadd.xlane.f32.xlu0 %v1205
      %v1207 = vpop.xlane.xlu0 %1206
      %v1208 = vsel %vm231, %v1188, 0.0
      %1209 = vadd.xlane.f32.xlu0 %v1208
      %v1210 = vpop.xlane.xlu0 %1209
      %v1211 = vsel %vm231, %v1190, 0.0
      %1212 = vadd.xlane.f32.xlu0 %v1211
      %v1213 = vpop.xlane.xlu0 %1212
      %v1214 = vsel %vm231, %v1192, 0.0
      %1215 = vadd.xlane.f32.xlu0 %v1214
      %v1216 = vpop.xlane.xlu0 %1215
      %v1217 = vrcp.pop %v1195
      %v1218 = vrcp.pop %v1198
      %v1219 = vrcp.pop %v1201
      %v1220 = vrcp.pop %v1204
      %v1221 = vrcp.pop %v1207
      %v1222 = vrcp.pop %v1210
      %v1223 = vrcp.pop %v1213
      %v1224 = vrcp.pop %v1216
      %v1225 = vmul.f32 %v1178, %v1217
      %v1226 = vmul.f32 %v1180, %v1218
      %v1227 = vmul.f32 %v1182, %v1219
      %v1228 = vmul.f32 %v1184, %v1220
      %v1229 = vmul.f32 %v1186, %v1221
      %v1230 = vmul.f32 %v1188, %v1222
      %v1231 = vmul.f32 %v1190, %v1223
      %v1232 = vmul.f32 %v1192, %v1224
      %v1233 = vpack.c.bf16 %v1226, %v1225
      %v1234 = vpack.c.bf16 %v1228, %v1227
      %v1235 = vpack.c.bf16 %v1230, %v1229
      %v1236 = vpack.c.bf16 %v1232, %v1231
      %1237 = vrot.lane.b32.xlu0 %v1080, 40
      %v1238 = vpop.permute.xlu0 %1237
      %1239 = vrot.lane.b32.xlu0 %v1081, 40
      %v1240 = vpop.permute.xlu0 %1239
      %1241 = vrot.lane.b32.xlu0 %v1082, 40
      %v1242 = vpop.permute.xlu0 %1241
      %1243 = vrot.lane.b32.xlu0 %v1083, 40
      %v1244 = vpop.permute.xlu0 %1243
      %v1250 = vsel %vm231, %v1233, 0
      %v1253 = vsel %vm231, %v1234, 0
      %v1256 = vsel %vm231, %v1235, 0
      %v1259 = vsel %vm231, %v1236, 0
      %1261 = vmatpush.bf16.msra.mxu0 0
      %1262 = vmatpush.bf16.msra.mxu0 0
      %1263 = vmatpush.bf16.msra.mxu0 0
      %1264 = vmatpush.bf16.msra.mxu0 0
      %1265 = vmatpush.bf16.msra.mxu0 %v1244
      %1266 = vmatpush.bf16.msra.mxu0 %v1242
      %1267 = vmatpush.bf16.msra.mxu0 %v1240
      %1268 = vmatpush.bf16.msra.mxu0 %v1238
      %1269 = vmatmul.bf16.gmra.mxu0 %v1250
      %v1270 = vpop.f32.mrf.mxu0
      %v1271 = vadd.f32 0.0, %v1270
      %v1272 = vpop.f32.mrf.mxu0
      %v1273 = vadd.f32 0.0, %v1272
      %1274 = vmatmul.bf16.gmra.mxu0 %v1253
      %v1275 = vpop.f32.mrf.mxu0
      %v1276 = vadd.f32 0.0, %v1275
      %v1277 = vpop.f32.mrf.mxu0
      %v1278 = vadd.f32 0.0, %v1277
      %1279 = vmatmul.bf16.gmra.mxu0 %v1256
      %v1280 = vpop.f32.mrf.mxu0
      %v1281 = vadd.f32 0.0, %v1280
      %v1282 = vpop.f32.mrf.mxu0
      %v1283 = vadd.f32 0.0, %v1282
      %1284 = vmatmul.bf16.gmra.mxu0 %v1259
      %v1285 = vpop.f32.mrf.mxu0
      %v1286 = vadd.f32 0.0, %v1285
      %v1287 = vpop.f32.mrf.mxu0
      %v1288 = vadd.f32 0.0, %v1287
      %1289 = vdwg.mxu0
      %v1290 = vpack.c.bf16 %v1271, %v1271
      %v1291 = vpack.c.bf16 %v1273, %v1273
      %v1292 = vpack.c.bf16 %v1276, %v1276
      %v1293 = vpack.c.bf16 %v1278, %v1278
      %v1294 = vpack.c.bf16 %v1281, %v1281
      %v1295 = vpack.c.bf16 %v1283, %v1283
      %v1296 = vpack.c.bf16 %v1286, %v1286
      %v1297 = vpack.c.bf16 %v1288, %v1288
      %1306 = vrot.lane.b32.xlu0 %v1290, 24
      %v1307 = vpop.permute.xlu0 %1306
      %1308 = vrot.lane.b32.xlu0 %v1291, 24
      %v1309 = vpop.permute.xlu0 %1308
      %1310 = vrot.lane.b32.xlu0 %v1292, 24
      %v1311 = vpop.permute.xlu0 %1310
      %1312 = vrot.lane.b32.xlu0 %v1293, 24
      %v1313 = vpop.permute.xlu0 %1312
      %1314 = vrot.lane.b32.xlu0 %v1294, 24
      %v1315 = vpop.permute.xlu0 %1314
      %1316 = vrot.lane.b32.xlu0 %v1295, 24
      %v1317 = vpop.permute.xlu0 %1316
      %1318 = vrot.lane.b32.xlu0 %v1296, 24
      %v1319 = vpop.permute.xlu0 %1318
      %1320 = vrot.lane.b32.xlu0 %v1297, 24
      %v1321 = vpop.permute.xlu0 %1320
      %vm1330 = vcmask 257216
      %1331 = vst.msk [vmem:[%s118] sm:$0xf] %vm1330, %v1307
      %1332 = vst.msk [vmem:[%s118 + $0x4] sm:$0xf] %vm1330, %v1309
      %1333 = vst.msk [vmem:[%s118 + $0x8] sm:$0xf] %vm1330, %v1311
      %1334 = vst.msk [vmem:[%s118 + $0xc] sm:$0xf] %vm1330, %v1313
      %1335 = vst.msk [vmem:[%s118 + $0x10] sm:$0xf] %vm1330, %v1315
      %1336 = vst.msk [vmem:[%s118 + $0x14] sm:$0xf] %vm1330, %v1317
      %1337 = vst.msk [vmem:[%s118 + $0x18] sm:$0xf] %vm1330, %v1319
      %1338 = vst.msk [vmem:[%s118 + $0x1c] sm:$0xf] %vm1330, %v1321
      %s1339 = smul.u32 8, %s12
      %p1340 = scmp.lt.s32.totalorder %s1339, 15
      %s1341 = scalar_select %p1340, %s1339, 15
      %s1342 = smul.addr %s1341, 4
      %s1343 = scalar_lea.vmem %s1, %s1342
      // Predicated region
      $region25: #{attention_forward.4} parent=23 // pred_check
        %p1344 = pneg %p56
      $region26: #{attention_forward.4} parent=23 // pred_check_branch
        %1346 = sbr.rel (%p1344) target = $region28
      $region27: #{attention_forward.4} parent=23 // pred_region
        %s1347 = smul.u32 8, %s12
      $region28: #{attention_forward.4} parent=23 // pred_fallthru
        _
    $region24: #{attention_forward.4} parent=5 // pred_fallthru
      _
    %p1348 = scmp.le.s32.totalorder 2, %s7
    // Predicated region
    $region29: #{attention_forward.4} parent=5 // pred_check
      %p1349 = pneg %p1348
    $region30: #{attention_forward.4} parent=5 // pred_check_branch
      %1351 = sbr.rel (%p1349) target = $region32
    $region31: #{attention_forward.4} parent=5 // pred_region
      %s1352 = ssub.s32 %s7, 2
      // Predicated region
      $region33: #{attention_forward.4} parent=31 // pred_check
        %p1353 = pneg %p62
      $region34: #{attention_forward.4} parent=31 // pred_check_branch
        %1355 = sbr.rel (%p1353) target = $region36
      $region35: #{attention_forward.4} parent=31 // pred_region
        %s1356 = smul.u32 8, %s13
        %p1357 = scmp.lt.s32.totalorder %s1356, 15
        %s1358 = scalar_select %p1357, %s1356, 15
        %s1359 = smul.addr %s1358, 4
        %s1360 = scalar_lea.vmem %s1, %s1359
      $region36: #{attention_forward.4} parent=31 // pred_fallthru
        _
    $region32: #{attention_forward.4} parent=5 // pred_fallthru
      _
  $region6: #{attention_forward.4} parent=0 // loop_footer
    %s11 = sadd.s32 1, %s7
  $region7: #{attention_forward.4} parent=0 // loop_footer_branch
    %6 = sbr.rel target = $region3
  $region8: #{attention_forward.4} parent=0 // loop_exit
    _

</llo_original>
